<compile_context>
chip_gen: v7x
topology: tpu7x:2x2x1
jax: 0.10.0
libtpu: 0.0.40
codegen_flags: <defaults>
</compile_context>

<pallas_src>
import math

import jax
import jax.numpy as jnp
from jax.experimental import pallas as pl
from jax.experimental.pallas import tpu as pltpu


def _make_divisible(v, divisor, min_value=None):
    if min_value is None:
        min_value = divisor
    new_v = max(min_value, int(v + divisor / 2) // divisor * divisor)
    if new_v < 0.9 * v:
        new_v += divisor
    return new_v


def _round_up(x, m):
    return (x + m - 1) // m * m


def _cdiv(a, b):
    return (a + b - 1) // b


# ------------------------------ Pallas kernels --------------------------------
def _mbconv_mu_kernel(pm_ref, w1_ref, sh1_ref, w2_ref, sh2_ref, omu_ref):
    """mu-only path (identity blocks: output sigma == input sigma, handled in wrapper).

    BN scales are pre-folded into w1/w2 columns; only additive shifts remain here.
    """
    mu1 = jnp.dot(pm_ref[...], w1_ref[...], preferred_element_type=jnp.float32)
    mu1 = mu1 + sh1_ref[0:1, :]
    mu1 = mu1 * jax.nn.sigmoid(mu1)                       # SiLU (EUP sigmoid)
    mu2 = jnp.dot(mu1.astype(jnp.bfloat16), w2_ref[...],
                  preferred_element_type=jnp.float32)
    omu_ref[...] = (mu2 + sh2_ref[0:1, :]).astype(omu_ref.dtype)


def _mbconv_mu_sigma_kernel(pm_ref, ps_ref, w1_ref, w1sq_ref, sh1_ref,
                            w2_ref, w2sq_ref, sh2_ref, omu_ref, osig_ref):
    """mu + sigma path (non-identity blocks).

    All BN scales are folded into the weights, so the sigma path is two pure matmuls
    with no elementwise BN work at all.  SiLU passes sigma through unchanged
    (matches reference SiLU.forward).
    """
    mu1 = jnp.dot(pm_ref[...], w1_ref[...], preferred_element_type=jnp.float32)
    mu1 = mu1 + sh1_ref[0:1, :]
    sg1 = jnp.dot(ps_ref[...], w1sq_ref[...], preferred_element_type=jnp.float32)
    mu1 = mu1 * jax.nn.sigmoid(mu1)
    mu2 = jnp.dot(mu1.astype(jnp.bfloat16), w2_ref[...],
                  preferred_element_type=jnp.float32)
    sg2 = jnp.dot(sg1.astype(jnp.bfloat16), w2sq_ref[...],
                  preferred_element_type=jnp.float32)
    omu_ref[...] = (mu2 + sh2_ref[0:1, :]).astype(omu_ref.dtype)
    osig_ref[...] = sg2.astype(osig_ref.dtype)


# ------------------------------- JAX glue ------------------------------------
def _im2col_3x3(x_nhwc, stride):
    """Extract 3x3 patches (padding=1). Returns (N*Ho*Wo, 9*C), Ho, Wo."""
    N, H, W, C = x_nhwc.shape
    Ho = (H + 2 - 3) // stride + 1
    Wo = (W + 2 - 3) // stride + 1
    xp = jnp.pad(x_nhwc, ((0, 0), (1, 1), (1, 1), (0, 0)))
    cols = []
    for dy in range(3):
        for dx in range(3):
            cols.append(xp[:, dy:dy + stride * (Ho - 1) + 1:stride,
                              dx:dx + stride * (Wo - 1) + 1:stride, :])
    patches = jnp.stack(cols, axis=3)             # (N,Ho,Wo,9,C): (ky,kx) outer, C inner
    return patches.reshape(N * Ho * Wo, 9 * C), Ho, Wo


def _pack_shift(shift, width):
    """Pack a BN shift row into a sublane-aligned (8, width) f32 block (row 0 used)."""
    out = jnp.zeros((8, width), jnp.float32)
    return out.at[0, :shift.shape[0]].set(shift)


def _vmem_budgets():
    """(tile_budget_bytes, vmem_limit_bytes, two_tensorcores) per TPU generation."""
    try:
        kind = jax.devices()[0].device_kind.lower()
    except Exception:
        kind = ""
    if "7" in kind:                       # v7x: 64 MiB VMEM per TensorCore, 2 TCs/chip
        return 40 << 20, 48 << 20, True
    # v4 / v5e / v6e: 128 MiB VMEM, single TensorCore
    return 80 << 20, 100 << 20, False


def _choose_row_tile(M, stream_row_bytes, compute_row_bytes, fixed_bytes,
                     budget_bytes, two_cores):
    """Largest power-of-two row tile (128..1024) that fits the per-generation VMEM budget."""
    tm = 1024

    def fits(t):
        # double-buffered row streams + single-buffered weights + in-kernel temporaries
        return fixed_bytes + 2 * t * stream_row_bytes + t * compute_row_bytes <= budget_bytes

    while tm > 128 and not fits(tm):
        tm //= 2
    # don't tile (much) larger than the problem
    while tm > 128 and tm >= 2 * M:
        tm //= 2
    if two_cores:
        # v7x: keep >= 2 grid steps so both TensorCores get work, but never below 256 rows
        while tm > 256 and _cdiv(M, tm) < 2:
            tm //= 2
    return max(tm, 128)


def init_mbconv_params(key, inp, oup, expand_ratio):
    hidden = round(inp * expand_ratio)
    ks = jax.random.split(key, 8)
    w1 = jax.random.normal(ks[0], (hidden, inp, 3, 3), jnp.float32) / math.sqrt(9 * inp)
    g1 = 1.0 + 0.1 * jax.random.normal(ks[1], (hidden,), jnp.float32)
    b1 = 0.1 * jax.random.normal(ks[2], (hidden,), jnp.float32)
    m1 = 0.1 * jax.random.normal(ks[3], (hidden,), jnp.float32)
    v1 = jnp.abs(jax.random.normal(ks[4], (hidden,), jnp.float32)) + 0.5
    w2 = jax.random.normal(ks[5], (oup, hidden, 1, 1), jnp.float32) / math.sqrt(hidden)
    g2 = 1.0 + 0.1 * jax.random.normal(ks[6], (oup,), jnp.float32)
    b2 = 0.1 * jax.random.normal(ks[7], (oup,), jnp.float32)
    m2 = jnp.zeros((oup,), jnp.float32)
    v2 = jnp.ones((oup,), jnp.float32)
    return dict(w1=w1, bn1=(g1, b1, m1, v1), w2=w2, bn2=(g2, b2, m2, v2))


def mbconv_forward(params, x_mu, x_sigma, *, inp, oup, stride, expand_ratio, use_se=False):
    # TODO(synk): use_se=True path (SELayer with vdp.AdaptiveAvgPool2d / vdp.Linear) not
    # implemented — the reference SELayer.forward is itself broken (`y` used before def).
    assert not use_se
    eps = 1e-5
    hidden = round(inp * expand_ratio)
    identity = (stride == 1) and (inp == oup)

    N, C, H, W = x_mu.shape
    assert C == inp

    # --- fold BN scales into conv weights (once, on weights, outside the kernel) -------
    g1, bta1, m1, v1 = params["bn1"]
    g2, bta2, m2, v2 = params["bn2"]
    s1 = g1 / jnp.sqrt(v1 + eps)
    s2 = g2 / jnp.sqrt(v2 + eps)
    sh1 = bta1 - m1 * s1
    sh2 = bta2 - m2 * s2

    K1 = 9 * inp
    K1p = _round_up(K1, 128)        # lane-dense patch stream / contraction dim
    hp = _round_up(hidden, 128)     # lane-dense hidden width
    op = _round_up(oup, 128)        # lane-dense output width (unmasked stores)

    # torch conv weight (Cout, Cin, kh, kw) -> (ky,kx,Cin)-major matmul matrix
    w1 = jnp.transpose(params["w1"], (2, 3, 1, 0)).reshape(K1, hidden)
    w2 = params["w2"][:, :, 0, 0].T                                   # (hidden, oup)
    w1_b = jnp.pad(w1 * s1[None, :],
                   ((0, K1p - K1), (0, hp - hidden))).astype(jnp.bfloat16)
    w2_b = jnp.pad(w2 * s2[None, :],
                   ((0, hp - hidden), (0, op - oup))).astype(jnp.bfloat16)
    sh1_b = _pack_shift(sh1, hp)
    sh2_b = _pack_shift(sh2, op)

    # --- im2col patches built directly in bf16 (halves the dominant HBM stream) --------
    mu_nhwc = jnp.transpose(x_mu, (0, 2, 3, 1)).astype(jnp.bfloat16)
    pm, Ho, Wo = _im2col_3x3(mu_nhwc, stride)
    M = N * Ho * Wo

    budget, vmem_limit, two_cores = _vmem_budgets()

    if identity:
        stream_row = K1p * 2 + op * 2                        # bf16 patches in, bf16 mu out
        compute_row = hp * 4 + hp * 2 + op * 4               # mu1 f32 + bf16 cast + mu2 f32
        fixed = (K1p * hp + hp * op) * 2 + 8 * (hp + op) * 4  # Buffered(1) weights + shifts
    else:
        stream_row = 2 * K1p * 2 + 2 * op * 2
        compute_row = 2 * (hp * 4 + hp * 2) + 2 * op * 4
        fixed = 2 * (K1p * hp + hp * op) * 2 + 8 * (hp + op) * 4
    tm = _choose_row_tile(M, stream_row, compute_row, fixed, budget, two_cores)
    M_pad = _cdiv(M, tm) * tm
    grid = (M_pad // tm,)

    # single pad covers both M rows and K columns; patches stay bf16 throughout
    pm_b = jnp.pad(pm, ((0, M_pad - M), (0, K1p - K1)))

    def row_spec(width):
        return pl.BlockSpec((tm, width), lambda i: (i, 0))

    def const_spec(r, c):
        # constant across the grid: single-buffered (halves resident weight VMEM)
        return pl.BlockSpec((r, c), lambda i: (0, 0), pipeline_mode=pl.Buffered(1))

    cparams = pltpu.CompilerParams(
        dimension_semantics=("parallel",),
        vmem_limit_bytes=vmem_limit)

    if identity:
        # forward(): return (x[0] + mu, x[1]) — sigma path skipped entirely; residual add
        # fused into the wrapper epilogue (no residual/sigma streams through the kernel).
        out_mu = pl.pallas_call(
            _mbconv_mu_kernel,
            out_shape=jax.ShapeDtypeStruct((M_pad, op), jnp.bfloat16),
            grid_spec=pltpu.PrefetchScalarGridSpec(
                num_scalar_prefetch=0,
                grid=grid,
                in_specs=[row_spec(K1p),
                          const_spec(K1p, hp), const_spec(8, hp),
                          const_spec(hp, op), const_spec(8, op)],
                out_specs=row_spec(op)),
            compiler_params=cparams,
        )(pm_b, w1_b, sh1_b, w2_b, sh2_b)
        mu_nchw = jnp.transpose(out_mu[:M, :oup].reshape(N, Ho, Wo, oup),
                                (0, 3, 1, 2)).astype(x_mu.dtype)
        return x_mu + mu_nchw, x_sigma

    sg_nhwc = jnp.transpose(x_sigma, (0, 2, 3, 1)).astype(jnp.bfloat16)
    ps, _, _ = _im2col_3x3(sg_nhwc, stride)
    ps_b = jnp.pad(ps, ((0, M_pad - M), (0, K1p - K1)))
    # BN scale^2 folded into the squared weights; padded columns stay exactly zero
    w1sq_b = jnp.pad((w1 * w1) * (s1 * s1)[None, :],
                     ((0, K1p - K1), (0, hp - hidden))).astype(jnp.bfloat16)
    w2sq_b = jnp.pad((w2 * w2) * (s2 * s2)[None, :],
                     ((0, hp - hidden), (0, op - oup))).astype(jnp.bfloat16)

    out_mu, out_sg = pl.pallas_call(
        _mbconv_mu_sigma_kernel,
        out_shape=(jax.ShapeDtypeStruct((M_pad, op), jnp.bfloat16),
                   jax.ShapeDtypeStruct((M_pad, op), jnp.bfloat16)),
        grid_spec=pltpu.PrefetchScalarGridSpec(
            num_scalar_prefetch=0,
            grid=grid,
            in_specs=[row_spec(K1p), row_spec(K1p),
                      const_spec(K1p, hp), const_spec(K1p, hp), const_spec(8, hp),
                      const_spec(hp, op), const_spec(hp, op), const_spec(8, op)],
            out_specs=[row_spec(op), row_spec(op)]),
        compiler_params=cparams,
    )(pm_b, ps_b, w1_b, w1sq_b, sh1_b, w2_b, w2sq_b, sh2_b)

    mu_nchw = jnp.transpose(out_mu[:M, :oup].reshape(N, Ho, Wo, oup),
                            (0, 3, 1, 2)).astype(x_mu.dtype)
    sg_nchw = jnp.transpose(out_sg[:M, :oup].reshape(N, Ho, Wo, oup),
                            (0, 3, 1, 2)).astype(x_sigma.dtype)
    return mu_nchw, sg_nchw


# --------------------------- pure-JAX reference -------------------------------
def mbconv_reference(params, x_mu, x_sigma, *, inp, oup, stride, expand_ratio):
    eps = 1e-5
    hidden = round(inp * expand_ratio)
    identity = (stride == 1) and (inp == oup)
    dn = ("NCHW", "OIHW", "NCHW")
    w1, w2 = params["w1"], params["w2"]
    mu = jax.lax.conv_general_dilated(x_mu, w1, (stride, stride), ((1, 1), (1, 1)), dimension_numbers=dn)
    sg = jax.lax.conv_general_dilated(x_sigma, w1 * w1, (stride, stride), ((1, 1), (1, 1)), dimension_numbers=dn)
    g1, b1, m1, v1 = params["bn1"]
    s1 = (g1 / jnp.sqrt(v1 + eps)).reshape(1, hidden, 1, 1)
    sh1 = (b1 - m1 * (g1 / jnp.sqrt(v1 + eps))).reshape(1, hidden, 1, 1)
    mu = mu * s1 + sh1
    sg = sg * s1 * s1
    mu = mu * jax.nn.sigmoid(mu)
    mu2 = jax.lax.conv_general_dilated(mu, w2, (1, 1), ((0, 0), (0, 0)), dimension_numbers=dn)
    sg2 = jax.lax.conv_general_dilated(sg, w2 * w2, (1, 1), ((0, 0), (0, 0)), dimension_numbers=dn)
    g2, b2, m2, v2 = params["bn2"]
    s2 = (g2 / jnp.sqrt(v2 + eps)).reshape(1, oup, 1, 1)
    sh2 = (b2 - m2 * (g2 / jnp.sqrt(v2 + eps))).reshape(1, oup, 1, 1)
    mu2 = mu2 * s2 + sh2
    sg2 = sg2 * s2 * s2
    if identity:
        return x_mu + mu2, x_sigma
    return mu2, sg2


if __name__ == "__main__":
    key = jax.random.PRNGKey(0)
    kp1, kp2, k_mu, k_sg = jax.random.split(key, 4)

    N, H, W = 2, 16, 16
    x_mu = jax.random.normal(k_mu, (N, 4, H, W), jnp.float32)
    x_sigma = 0.05 * jnp.abs(jax.random.normal(k_sg, (N, 4, H, W), jnp.float32))

    # Case 1: identity block (stride=1, inp==oup=4) -> mu-only kernel + fused residual.
    inp, oup, stride, er = 4, 4, 1, 4
    params = init_mbconv_params(kp1, inp, oup, er)
    out_mu, out_sg = mbconv_forward(params, x_mu, x_sigma, inp=inp, oup=oup,
                                    stride=stride, expand_ratio=er)
    jax.block_until_ready((out_mu, out_sg))
    ref_mu, ref_sg = mbconv_reference(params, x_mu, x_sigma, inp=inp, oup=oup,
                                      stride=stride, expand_ratio=er)
    assert out_mu.shape == (N, oup, H, W) and out_sg.shape == (N, oup, H, W)
    assert jnp.allclose(out_mu, ref_mu, rtol=5e-2, atol=5e-2)   # bf16 MXU path
    assert jnp.allclose(out_sg, ref_sg)                         # sigma passthrough, exact

    # Case 2: non-identity block (stride=2, oup=8) -> mu+sigma kernel.
    inp2, oup2, stride2, er2 = 4, 8, 2, 4
    params2 = init_mbconv_params(kp2, inp2, oup2, er2)
    out_mu2, out_sg2 = mbconv_forward(params2, x_mu, x_sigma, inp=inp2, oup=oup2,
                                      stride=stride2, expand_ratio=er2)
    jax.block_until_ready((out_mu2, out_sg2))
    ref_mu2, ref_sg2 = mbconv_reference(params2, x_mu, x_sigma, inp=inp2, oup=oup2,
                                        stride=stride2, expand_ratio=er2)
    assert out_mu2.shape == (N, oup2, H // 2, W // 2)
    assert out_sg2.shape == (N, oup2, H // 2, W // 2)
    assert jnp.allclose(out_mu2, ref_mu2, rtol=5e-2, atol=5e-2)
    # sigma path is a positive-definite sum (no cancellation): check relative error directly
    rel = jnp.abs(out_sg2 - ref_sg2) / (jnp.abs(ref_sg2) + 1e-8)
    assert float(jnp.max(rel)) < 3e-2
    assert jnp.allclose(out_sg2, ref_sg2, rtol=5e-2, atol=5e-2)

    print("KERNEL_OK")
</pallas_src>

<mosaic_0001>
module attributes {stable_mosaic.version = 11 : i64} {
  func.func @_mbconv_mu_kernel(%arg0: i32, %arg1: memref<512x128xbf16, #tpu.memory_space<vmem>>, %arg2: memref<128x128xbf16, #tpu.memory_space<vmem>>, %arg3: memref<8x128xf32, #tpu.memory_space<vmem>>, %arg4: memref<128x128xbf16, #tpu.memory_space<vmem>>, %arg5: memref<8x128xf32, #tpu.memory_space<vmem>>, %arg6: memref<512x128xbf16, #tpu.memory_space<vmem>>) attributes {dimension_semantics = [#tpu.dimension_semantics<parallel>], iteration_bounds = array<i64: 1>, scalar_prefetch = 0 : i64, scratch_operands = 0 : i64, tpu.core_type = #tpu.core_type<tc>, window_params = [{transform_indices = @transform_0, window_bounds = array<i64: 512, 128>}, {pipeline_mode = #tpu.pipeline_mode<synchronous>, transform_indices = @transform_1, window_bounds = array<i64: 128, 128>}, {pipeline_mode = #tpu.pipeline_mode<synchronous>, transform_indices = @transform_2, window_bounds = array<i64: 8, 128>}, {pipeline_mode = #tpu.pipeline_mode<synchronous>, transform_indices = @transform_3, window_bounds = array<i64: 128, 128>}, {pipeline_mode = #tpu.pipeline_mode<synchronous>, transform_indices = @transform_4, window_bounds = array<i64: 8, 128>}, {transform_indices = @transform_5, window_bounds = array<i64: 512, 128>}]} {
    %c0 = arith.constant 0 : index
    %c0_0 = arith.constant 0 : index
    %0 = vector.load %arg1[%c0, %c0_0] : memref<512x128xbf16, #tpu.memory_space<vmem>>, vector<512x128xbf16>
    %c0_1 = arith.constant 0 : index
    %c0_2 = arith.constant 0 : index
    %1 = vector.load %arg2[%c0_1, %c0_2] : memref<128x128xbf16, #tpu.memory_space<vmem>>, vector<128x128xbf16>
    %cst = arith.constant dense<0.000000e+00> : vector<512x128xf32>
    %2 = tpu.matmul %0, %1, %cst {dimension_numbers = #tpu.dot_dimension_numbers<[1], [0], [0], [1], [0, 0, 1, 1], [], []>} : vector<512x128xbf16>, vector<128x128xbf16>, vector<512x128xf32> -> vector<512x128xf32>
    %c0_3 = arith.constant 0 : index
    %c0_4 = arith.constant 0 : index
    %3 = vector.load %arg3[%c0_3, %c0_4] : memref<8x128xf32, #tpu.memory_space<vmem>>, vector<1x128xf32>
    %4 = vector.broadcast %3 : vector<1x128xf32> to vector<512x128xf32>
    %5 = arith.addf %2, %4 : vector<512x128xf32>
    %6 = arith.negf %5 : vector<512x128xf32>
    %7 = math.exp %6 : vector<512x128xf32>
    %cst_5 = arith.constant 1.000000e+00 : f32
    %8 = vector.broadcast %cst_5 : f32 to vector<512x128xf32>
    %9 = arith.addf %8, %7 : vector<512x128xf32>
    %10 = arith.divf %8, %9 : vector<512x128xf32>
    %11 = arith.mulf %5, %10 : vector<512x128xf32>
    %12 = arith.truncf %11 : vector<512x128xf32> to vector<512x128xbf16>
    %c0_6 = arith.constant 0 : index
    %c0_7 = arith.constant 0 : index
    %13 = vector.load %arg4[%c0_6, %c0_7] : memref<128x128xbf16, #tpu.memory_space<vmem>>, vector<128x128xbf16>
    %cst_8 = arith.constant dense<0.000000e+00> : vector<512x128xf32>
    %14 = tpu.matmul %12, %13, %cst_8 {dimension_numbers = #tpu.dot_dimension_numbers<[1], [0], [0], [1], [0, 0, 1, 1], [], []>} : vector<512x128xbf16>, vector<128x128xbf16>, vector<512x128xf32> -> vector<512x128xf32>
    %c0_9 = arith.constant 0 : index
    %c0_10 = arith.constant 0 : index
    %15 = vector.load %arg5[%c0_9, %c0_10] : memref<8x128xf32, #tpu.memory_space<vmem>>, vector<1x128xf32>
    %16 = vector.broadcast %15 : vector<1x128xf32> to vector<512x128xf32>
    %17 = arith.addf %14, %16 : vector<512x128xf32>
    %18 = arith.truncf %17 : vector<512x128xf32> to vector<512x128xbf16>
    %c0_11 = arith.constant 0 : index
    %c0_12 = arith.constant 0 : index
    %19 = vector.load %arg6[%c0_11, %c0_12] : memref<512x128xbf16, #tpu.memory_space<vmem>>, vector<512x128xbf16>
    tpu.vector_store %arg6[%c0_11, %c0_12], %18 {strides = array<i32>} : memref<512x128xbf16, #tpu.memory_space<vmem>>, vector<512x128xbf16>,
    return
  }
  func.func @transform_0(%arg0: i32) -> (i32, i32) {
    %c0_i32 = arith.constant 0 : i32
    %c0_i32_0 = arith.constant 0 : i32
    return %arg0, %c0_i32 : i32, i32
  }
  func.func @transform_1(%arg0: i32) -> (i32, i32) {
    %c0_i32 = arith.constant 0 : i32
    %c0_i32_0 = arith.constant 0 : i32
    %c0_i32_1 = arith.constant 0 : i32
    return %c0_i32, %c0_i32_0 : i32, i32
  }
  func.func @transform_2(%arg0: i32) -> (i32, i32) {
    %c0_i32 = arith.constant 0 : i32
    %c0_i32_0 = arith.constant 0 : i32
    %c0_i32_1 = arith.constant 0 : i32
    return %c0_i32, %c0_i32_0 : i32, i32
  }
  func.func @transform_3(%arg0: i32) -> (i32, i32) {
    %c0_i32 = arith.constant 0 : i32
    %c0_i32_0 = arith.constant 0 : i32
    %c0_i32_1 = arith.constant 0 : i32
    return %c0_i32, %c0_i32_0 : i32, i32
  }
  func.func @transform_4(%arg0: i32) -> (i32, i32) {
    %c0_i32 = arith.constant 0 : i32
    %c0_i32_0 = arith.constant 0 : i32
    %c0_i32_1 = arith.constant 0 : i32
    return %c0_i32, %c0_i32_0 : i32, i32
  }
  func.func @transform_5(%arg0: i32) -> (i32, i32) {
    %c0_i32 = arith.constant 0 : i32
    %c0_i32_0 = arith.constant 0 : i32
    return %arg0, %c0_i32 : i32, i32
  }
}

</mosaic_0001>

<llo_original>
// kernel: tpu_custom_call.1
$region0: #{tpu_custom_call.1}
  #allocation0 [shape = 'u32[]', space=smem, size = 0x4, offset = 0x4, fixed_abs, tag = 'smem constant byte address 0x4 - core index']
  #allocation1 [shape = 'u32[144,128]{1,0:T(1,128)}', space=vmem, size = 0x12000, scoped, tag = 'internal scratch']
  %s0 = inlined_call_operand.hbm [shape: bf16[512,128], index: 0, kind: input, shape index: {}]
  %s1 = inlined_call_operand.hbm [shape: bf16[128,128], index: 1, kind: input, shape index: {}]
  %s2 = inlined_call_operand.hbm [shape: f32[8,128], index: 2, kind: input, shape index: {}]
  %s3 = inlined_call_operand.hbm [shape: bf16[128,128], index: 3, kind: input, shape index: {}]
  %s4 = inlined_call_operand.hbm [shape: f32[8,128], index: 4, kind: input, shape index: {}]
  %s5 = inlined_call_operand.hbm [shape: bf16[512,128], index: 5, kind: output, shape index: {}]
  %s6 = sld [smem:[#allocation0]]
  $region50: #{tpu_custom_call.1} parent=0
    _
  %s8 = ssub.s32 1, %s6
  %s9 = scalar_select 0, %s8, %s6
  $region1: #{tpu_custom_call.1} parent=0
    #allocation2 [shape = 'u8[131072]{0}', space=vmem, size = 0x20000, scoped, tag = 'input window, operand 0, single buffered']
    #allocation3 [shape = 's32[1]{0}', space=sflag, size = 0x4, scoped, tag = 'scoped memory for tpu_custom_call.1']
    #allocation4 [shape = 's32[1]{0}', space=sflag, size = 0x4, scoped, tag = 'scoped memory for tpu_custom_call.1']
    #allocation5 [shape = 'u8[32768]{0}', space=vmem, size = 0x8000, scoped, tag = 'input window, operand 1, single buffered']
    #allocation6 [shape = 's32[1]{0}', space=sflag, size = 0x4, scoped, tag = 'scoped memory for tpu_custom_call.1']
    #allocation7 [shape = 'u8[4096]{0}', space=vmem, size = 0x1000, scoped, tag = 'input window, operand 2, single buffered']
    #allocation8 [shape = 'u8[32768]{0}', space=vmem, size = 0x8000, scoped, tag = 'input window, operand 3, single buffered']
    #allocation9 [shape = 's32[1]{0}', space=sflag, size = 0x4, scoped, tag = 'scoped memory for tpu_custom_call.1']
    #allocation10 [shape = 'u8[4096]{0}', space=vmem, size = 0x1000, scoped, tag = 'input window, operand 4, single buffered']
    #allocation11 [shape = 'u8[131072]{0}', space=vmem, size = 0x20000, scoped, tag = 'output window, operand 0, single buffered']
    %10 = vsyncpa [#allocation3], 0
    %11 = vsyncpa [#allocation6], 0
    %12 = vsyncpa [#allocation9], 0
    %13 = vsyncpa [#allocation4], 0
    // Predicated region
    $region2: #{tpu_custom_call.1} parent=1 // pred_check
      _
    $region3: #{tpu_custom_call.1} parent=1 // pred_check_branch
      %15 = sbr.rel (0) target = $region5
    $region4: #{tpu_custom_call.1} parent=1 // pred_region
      %s17 = ssub.s32 4096, 4096
      %18 = vsyncadd [#allocation3], %s17
      %s19 = sshll.u32 [#allocation2], 4
      %s20 = int_to_ptr.vmem [resolvable:$true] %s19
      %25 = dma.hbm_to_vmem [thread:$0]  %s0, 4096, %s20, [#allocation3], 64, 64, 4
    $region5: #{tpu_custom_call.1} parent=1 // pred_fallthru
      _
    // Predicated region
    $region6: #{tpu_custom_call.1} parent=1 // pred_check
      _
    $region7: #{tpu_custom_call.1} parent=1 // pred_check_branch
      %27 = sbr.rel (0) target = $region9
    $region8: #{tpu_custom_call.1} parent=1 // pred_region
      %s29 = ssub.s32 1024, 1024
      %30 = vsyncadd [#allocation6], %s29
      %s31 = sshll.u32 [#allocation5], 4
      %s32 = int_to_ptr.vmem [resolvable:$true] %s31
      %37 = dma.hbm_to_vmem [thread:$0]  %s1, 1024, %s32, [#allocation6], 64, 64, 4
    $region9: #{tpu_custom_call.1} parent=1 // pred_fallthru
      _
    // Predicated region
    $region10: #{tpu_custom_call.1} parent=1 // pred_check
      _
    $region11: #{tpu_custom_call.1} parent=1 // pred_check_branch
      %39 = sbr.rel (0) target = $region13
    $region12: #{tpu_custom_call.1} parent=1 // pred_region
      %s41 = ssub.s32 128, 128
      %42 = vsyncadd [#allocation6], %s41
      %s44 = sshll.u32 [#allocation7], 4
      %s45 = int_to_ptr.vmem [resolvable:$true] %s44
      %47 = dma.hbm_to_vmem [thread:$0]  %s2, 128, %s45, [#allocation6]
    $region13: #{tpu_custom_call.1} parent=1 // pred_fallthru
      _
    // Predicated region
    $region14: #{tpu_custom_call.1} parent=1 // pred_check
      _
    $region15: #{tpu_custom_call.1} parent=1 // pred_check_branch
      %49 = sbr.rel (0) target = $region17
    $region16: #{tpu_custom_call.1} parent=1 // pred_region
      %s51 = ssub.s32 1024, 1024
      %52 = vsyncadd [#allocation9], %s51
      %s53 = sshll.u32 [#allocation8], 4
      %s54 = int_to_ptr.vmem [resolvable:$true] %s53
      %59 = dma.hbm_to_vmem [thread:$0]  %s3, 1024, %s54, [#allocation9], 64, 64, 4
    $region17: #{tpu_custom_call.1} parent=1 // pred_fallthru
      _
    // Predicated region
    $region18: #{tpu_custom_call.1} parent=1 // pred_check
      _
    $region19: #{tpu_custom_call.1} parent=1 // pred_check_branch
      %61 = sbr.rel (0) target = $region21
    $region20: #{tpu_custom_call.1} parent=1 // pred_region
      %s63 = ssub.s32 128, 128
      %64 = vsyncadd [#allocation9], %s63
      %s66 = sshll.u32 [#allocation10], 4
      %s67 = int_to_ptr.vmem [resolvable:$true] %s66
      %69 = dma.hbm_to_vmem [thread:$0]  %s4, 128, %s67, [#allocation9]
    $region21: #{tpu_custom_call.1} parent=1 // pred_fallthru
      _
    // Predicated region
    $region22: #{tpu_custom_call.1} parent=1 // pred_check
      _
    $region23: #{tpu_custom_call.1} parent=1 // pred_check_branch
      %71 = sbr.rel (0) target = $region25
    $region24: #{tpu_custom_call.1} parent=1 // pred_region
      %72 = dma.done [#allocation3], 4096
    $region25: #{tpu_custom_call.1} parent=1 // pred_fallthru
      _
    // Predicated region
    $region26: #{tpu_custom_call.1} parent=1 // pred_check
      _
    $region27: #{tpu_custom_call.1} parent=1 // pred_check_branch
      %74 = sbr.rel (0) target = $region29
    $region28: #{tpu_custom_call.1} parent=1 // pred_region
      %75 = dma.done [#allocation6], 1024
    $region29: #{tpu_custom_call.1} parent=1 // pred_fallthru
      _
    // Predicated region
    $region30: #{tpu_custom_call.1} parent=1 // pred_check
      _
    $region31: #{tpu_custom_call.1} parent=1 // pred_check_branch
      %77 = sbr.rel (0) target = $region33
    $region32: #{tpu_custom_call.1} parent=1 // pred_region
      %78 = dma.done [#allocation6], 128
    $region33: #{tpu_custom_call.1} parent=1 // pred_fallthru
      _
    // Predicated region
    $region34: #{tpu_custom_call.1} parent=1 // pred_check
      _
    $region35: #{tpu_custom_call.1} parent=1 // pred_check_branch
      %80 = sbr.rel (0) target = $region37
    $region36: #{tpu_custom_call.1} parent=1 // pred_region
      %81 = dma.done [#allocation9], 1024
    $region37: #{tpu_custom_call.1} parent=1 // pred_fallthru
      _
    // Predicated region
    $region38: #{tpu_custom_call.1} parent=1 // pred_check
      _
    $region39: #{tpu_custom_call.1} parent=1 // pred_check_branch
      %83 = sbr.rel (0) target = $region41
    $region40: #{tpu_custom_call.1} parent=1 // pred_region
      %84 = dma.done [#allocation9], 128
    $region41: #{tpu_custom_call.1} parent=1 // pred_fallthru
      _
    %v86 = vld [vmem:[#allocation2] sm:$0xf]
    %v87 = vld [vmem:[#allocation2 + $0x4] sm:$0xf]
    %v88 = vld [vmem:[#allocation2 + $0x8] sm:$0xf]
    %v89 = vld [vmem:[#allocation2 + $0xc] sm:$0xf]
    %v90 = vld [vmem:[#allocation2 + $0x10] sm:$0xf]
    %v91 = vld [vmem:[#allocation2 + $0x14] sm:$0xf]
    %v92 = vld [vmem:[#allocation2 + $0x18] sm:$0xf]
    %v93 = vld [vmem:[#allocation2 + $0x1c] sm:$0xf]
    %v94 = vld [vmem:[#allocation2 + $0x20] sm:$0xf]
    %v95 = vld [vmem:[#allocation2 + $0x24] sm:$0xf]
    %v96 = vld [vmem:[#allocation2 + $0x28] sm:$0xf]
    %v97 = vld [vmem:[#allocation2 + $0x2c] sm:$0xf]
    %v98 = vld [vmem:[#allocation2 + $0x30] sm:$0xf]
    %v99 = vld [vmem:[#allocation2 + $0x34] sm:$0xf]
    %v100 = vld [vmem:[#allocation2 + $0x38] sm:$0xf]
    %v101 = vld [vmem:[#allocation2 + $0x3c] sm:$0xf]
    %v102 = vld [vmem:[#allocation2 + $0x40] sm:$0xf]
    %v103 = vld [vmem:[#allocation2 + $0x44] sm:$0xf]
    %v104 = vld [vmem:[#allocation2 + $0x48] sm:$0xf]
    %v105 = vld [vmem:[#allocation2 + $0x4c] sm:$0xf]
    %v106 = vld [vmem:[#allocation2 + $0x50] sm:$0xf]
    %v107 = vld [vmem:[#allocation2 + $0x54] sm:$0xf]
    %v108 = vld [vmem:[#allocation2 + $0x58] sm:$0xf]
    %v109 = vld [vmem:[#allocation2 + $0x5c] sm:$0xf]
    %v110 = vld [vmem:[#allocation2 + $0x60] sm:$0xf]
    %v111 = vld [vmem:[#allocation2 + $0x64] sm:$0xf]
    %v112 = vld [vmem:[#allocation2 + $0x68] sm:$0xf]
    %v113 = vld [vmem:[#allocation2 + $0x6c] sm:$0xf]
    %v114 = vld [vmem:[#allocation2 + $0x70] sm:$0xf]
    %v115 = vld [vmem:[#allocation2 + $0x74] sm:$0xf]
    %v116 = vld [vmem:[#allocation2 + $0x78] sm:$0xf]
    %v117 = vld [vmem:[#allocation2 + $0x7c] sm:$0xf]
    %v118 = vld [vmem:[#allocation2 + $0x80] sm:$0xf]
    %v119 = vld [vmem:[#allocation2 + $0x84] sm:$0xf]
    %v120 = vld [vmem:[#allocation2 + $0x88] sm:$0xf]
    %v121 = vld [vmem:[#allocation2 + $0x8c] sm:$0xf]
    %v122 = vld [vmem:[#allocation2 + $0x90] sm:$0xf]
    %v123 = vld [vmem:[#allocation2 + $0x94] sm:$0xf]
    %v124 = vld [vmem:[#allocation2 + $0x98] sm:$0xf]
    %v125 = vld [vmem:[#allocation2 + $0x9c] sm:$0xf]
    %v126 = vld [vmem:[#allocation2 + $0xa0] sm:$0xf]
    %v127 = vld [vmem:[#allocation2 + $0xa4] sm:$0xf]
    %v128 = vld [vmem:[#allocation2 + $0xa8] sm:$0xf]
    %v129 = vld [vmem:[#allocation2 + $0xac] sm:$0xf]
    %v130 = vld [vmem:[#allocation2 + $0xb0] sm:$0xf]
    %v131 = vld [vmem:[#allocation2 + $0xb4] sm:$0xf]
    %v132 = vld [vmem:[#allocation2 + $0xb8] sm:$0xf]
    %v133 = vld [vmem:[#allocation2 + $0xbc] sm:$0xf]
    %v134 = vld [vmem:[#allocation2 + $0xc0] sm:$0xf]
    %v135 = vld [vmem:[#allocation2 + $0xc4] sm:$0xf]
    %v136 = vld [vmem:[#allocation2 + $0xc8] sm:$0xf]
    %v137 = vld [vmem:[#allocation2 + $0xcc] sm:$0xf]
    %v138 = vld [vmem:[#allocation2 + $0xd0] sm:$0xf]
    %v139 = vld [vmem:[#allocation2 + $0xd4] sm:$0xf]
    %v140 = vld [vmem:[#allocation2 + $0xd8] sm:$0xf]
    %v141 = vld [vmem:[#allocation2 + $0xdc] sm:$0xf]
    %v142 = vld [vmem:[#allocation2 + $0xe0] sm:$0xf]
    %v143 = vld [vmem:[#allocation2 + $0xe4] sm:$0xf]
    %v144 = vld [vmem:[#allocation2 + $0xe8] sm:$0xf]
    %v145 = vld [vmem:[#allocation2 + $0xec] sm:$0xf]
    %v146 = vld [vmem:[#allocation2 + $0xf0] sm:$0xf]
    %v147 = vld [vmem:[#allocation2 + $0xf4] sm:$0xf]
    %v148 = vld [vmem:[#allocation2 + $0xf8] sm:$0xf]
    %v149 = vld [vmem:[#allocation2 + $0xfc] sm:$0xf]
    %v150 = vld [vmem:[#allocation5] sm:$0xf]
    %v151 = vld [vmem:[#allocation5 + $0x4] sm:$0xf]
    %v152 = vld [vmem:[#allocation5 + $0x8] sm:$0xf]
    %v153 = vld [vmem:[#allocation5 + $0xc] sm:$0xf]
    %v154 = vld [vmem:[#allocation5 + $0x10] sm:$0xf]
    %v155 = vld [vmem:[#allocation5 + $0x14] sm:$0xf]
    %v156 = vld [vmem:[#allocation5 + $0x18] sm:$0xf]
    %v157 = vld [vmem:[#allocation5 + $0x1c] sm:$0xf]
    %v158 = vld [vmem:[#allocation5 + $0x20] sm:$0xf]
    %v159 = vld [vmem:[#allocation5 + $0x24] sm:$0xf]
    %v160 = vld [vmem:[#allocation5 + $0x28] sm:$0xf]
    %v161 = vld [vmem:[#allocation5 + $0x2c] sm:$0xf]
    %v162 = vld [vmem:[#allocation5 + $0x30] sm:$0xf]
    %v163 = vld [vmem:[#allocation5 + $0x34] sm:$0xf]
    %v164 = vld [vmem:[#allocation5 + $0x38] sm:$0xf]
    %v165 = vld [vmem:[#allocation5 + $0x3c] sm:$0xf]
    %v166 = vld [vmem:[#allocation7] sm:$0x1]
    %v167 = vlaneseq
    %v168 = vshrl.u32 %v167, 7
    %v169 = vsub.s32 0, %v168
    %v170 = vrot.slane %v166, %v169
    %v235 = vunpack.c.l.b16 %v86
    %v236 = vunpack.c.l.b16 %v87
    %v237 = vunpack.c.l.b16 %v88
    %v238 = vunpack.c.l.b16 %v89
    %v239 = vunpack.c.l.b16 %v90
    %v240 = vunpack.c.l.b16 %v91
    %v241 = vunpack.c.l.b16 %v92
    %v242 = vunpack.c.l.b16 %v93
    %v243 = vunpack.c.l.b16 %v94
    %v244 = vunpack.c.l.b16 %v95
    %v245 = vunpack.c.l.b16 %v96
    %v246 = vunpack.c.l.b16 %v97
    %v247 = vunpack.c.l.b16 %v98
    %v248 = vunpack.c.l.b16 %v99
    %v249 = vunpack.c.l.b16 %v100
    %v250 = vunpack.c.l.b16 %v101
    %v251 = vunpack.c.l.b16 %v102
    %v252 = vunpack.c.l.b16 %v103
    %v253 = vunpack.c.l.b16 %v104
    %v254 = vunpack.c.l.b16 %v105
    %v255 = vunpack.c.l.b16 %v106
    %v256 = vunpack.c.l.b16 %v107
    %v257 = vunpack.c.l.b16 %v108
    %v258 = vunpack.c.l.b16 %v109
    %v259 = vunpack.c.l.b16 %v110
    %v260 = vunpack.c.l.b16 %v111
    %v261 = vunpack.c.l.b16 %v112
    %v262 = vunpack.c.l.b16 %v113
    %v263 = vunpack.c.l.b16 %v114
    %v264 = vunpack.c.l.b16 %v115
    %v265 = vunpack.c.l.b16 %v116
    %v266 = vunpack.c.l.b16 %v117
    %v267 = vunpack.c.l.b16 %v118
    %v268 = vunpack.c.l.b16 %v119
    %v269 = vunpack.c.l.b16 %v120
    %v270 = vunpack.c.l.b16 %v121
    %v271 = vunpack.c.l.b16 %v122
    %v272 = vunpack.c.l.b16 %v123
    %v273 = vunpack.c.l.b16 %v124
    %v274 = vunpack.c.l.b16 %v125
    %v275 = vunpack.c.l.b16 %v126
    %v276 = vunpack.c.l.b16 %v127
    %v277 = vunpack.c.l.b16 %v128
    %v278 = vunpack.c.l.b16 %v129
    %v279 = vunpack.c.l.b16 %v130
    %v280 = vunpack.c.l.b16 %v131
    %v281 = vunpack.c.l.b16 %v132
    %v282 = vunpack.c.l.b16 %v133
    %v283 = vunpack.c.l.b16 %v134
    %v284 = vunpack.c.l.b16 %v135
    %v285 = vunpack.c.l.b16 %v136
    %v286 = vunpack.c.l.b16 %v137
    %v287 = vunpack.c.l.b16 %v138
    %v288 = vunpack.c.l.b16 %v139
    %v289 = vunpack.c.l.b16 %v140
    %v290 = vunpack.c.l.b16 %v141
    %v291 = vunpack.c.l.b16 %v142
    %v292 = vunpack.c.l.b16 %v143
    %v293 = vunpack.c.l.b16 %v144
    %v294 = vunpack.c.l.b16 %v145
    %v295 = vunpack.c.l.b16 %v146
    %v296 = vunpack.c.l.b16 %v147
    %v297 = vunpack.c.l.b16 %v148
    %v298 = vunpack.c.l.b16 %v149
    %v299 = vpack.c.b16 %v236, %v235
    %v300 = vpack.c.b16 %v238, %v237
    %v301 = vpack.c.b16 %v240, %v239
    %v302 = vpack.c.b16 %v242, %v241
    %v303 = vpack.c.b16 %v244, %v243
    %v304 = vpack.c.b16 %v246, %v245
    %v305 = vpack.c.b16 %v248, %v247
    %v306 = vpack.c.b16 %v250, %v249
    %v307 = vpack.c.b16 %v252, %v251
    %v308 = vpack.c.b16 %v254, %v253
    %v309 = vpack.c.b16 %v256, %v255
    %v310 = vpack.c.b16 %v258, %v257
    %v311 = vpack.c.b16 %v260, %v259
    %v312 = vpack.c.b16 %v262, %v261
    %v313 = vpack.c.b16 %v264, %v263
    %v314 = vpack.c.b16 %v266, %v265
    %v315 = vpack.c.b16 %v268, %v267
    %v316 = vpack.c.b16 %v270, %v269
    %v317 = vpack.c.b16 %v272, %v271
    %v318 = vpack.c.b16 %v274, %v273
    %v319 = vpack.c.b16 %v276, %v275
    %v320 = vpack.c.b16 %v278, %v277
    %v321 = vpack.c.b16 %v280, %v279
    %v322 = vpack.c.b16 %v282, %v281
    %v323 = vpack.c.b16 %v284, %v283
    %v324 = vpack.c.b16 %v286, %v285
    %v325 = vpack.c.b16 %v288, %v287
    %v326 = vpack.c.b16 %v290, %v289
    %v327 = vpack.c.b16 %v292, %v291
    %v328 = vpack.c.b16 %v294, %v293
    %v329 = vpack.c.b16 %v296, %v295
    %v330 = vpack.c.b16 %v298, %v297
    %v379 = vunpack.c.l.b16 %v150
    %v380 = vunpack.c.l.b16 %v151
    %v381 = vunpack.c.l.b16 %v152
    %v382 = vunpack.c.l.b16 %v153
    %v383 = vunpack.c.l.b16 %v154
    %v384 = vunpack.c.l.b16 %v155
    %v385 = vunpack.c.l.b16 %v156
    %v386 = vunpack.c.l.b16 %v157
    %v387 = vunpack.c.l.b16 %v158
    %v388 = vunpack.c.l.b16 %v159
    %v389 = vunpack.c.l.b16 %v160
    %v390 = vunpack.c.l.b16 %v161
    %v391 = vunpack.c.l.b16 %v162
    %v392 = vunpack.c.l.b16 %v163
    %v393 = vunpack.c.l.b16 %v164
    %v394 = vunpack.c.l.b16 %v165
    %v395 = vpack.c.b16 %v380, %v379
    %v396 = vpack.c.b16 %v382, %v381
    %v397 = vpack.c.b16 %v384, %v383
    %v398 = vpack.c.b16 %v386, %v385
    %v399 = vpack.c.b16 %v388, %v387
    %v400 = vpack.c.b16 %v390, %v389
    %v401 = vpack.c.b16 %v392, %v391
    %v402 = vpack.c.b16 %v394, %v393
    %411 = vmatprep.subr.bf16.mxu0 0
    %412 = vmatpush1.bf16.msra.mxu0 %v395
    %413 = vmatprep.subr.bf16.mxu0 0
    %414 = vmatpush1.bf16.msra.mxu0 %v396
    %415 = vmatprep.subr.bf16.mxu0 0
    %416 = vmatpush1.bf16.msra.mxu0 %v397
    %417 = vmatprep.subr.bf16.mxu0 0
    %418 = vmatpush1.bf16.msra.mxu0 %v398
    %419 = vmatprep.subr.bf16.mxu0 0
    %420 = vmatpush1.bf16.msra.mxu0 %v399
    %421 = vmatprep.subr.bf16.mxu0 0
    %422 = vmatpush1.bf16.msra.mxu0 %v400
    %423 = vmatprep.subr.bf16.mxu0 0
    %424 = vmatpush1.bf16.msra.mxu0 %v401
    %425 = vmatprep.subr.bf16.mxu0 0
    %426 = vmatpush1.bf16.msra.mxu0 %v402
    %427 = vmatprep.subr.bf16.mxu0 0
    %428 = vmatpush1.bf16.msra.mxu0 0
    %429 = vmatprep.subr.bf16.mxu0 0
    %430 = vmatpush1.bf16.msra.mxu0 0
    %431 = vmatprep.subr.bf16.mxu0 0
    %432 = vmatpush1.bf16.msra.mxu0 0
    %433 = vmatprep.subr.bf16.mxu0 0
    %434 = vmatpush1.bf16.msra.mxu0 0
    %435 = vmatprep.subr.bf16.mxu0 0
    %436 = vmatpush1.bf16.msra.mxu0 0
    %437 = vmatprep.subr.bf16.mxu0 0
    %438 = vmatpush1.bf16.msra.mxu0 0
    %439 = vmatprep.subr.bf16.mxu0 0
    %440 = vmatpush1.bf16.msra.mxu0 0
    %441 = vmatprep.subr.bf16.mxu0 0
    %442 = vmatpush1.bf16.msra.mxu0 0
    %443 = vmatprep.mubr.bf16.mxu0 0
    %444 = vmatmul.mubr.bf16.gmra.mrb[0].mxu0 %v299
    %v445 = vpop.f32.mrb[0].mxu0
    %v446 = vadd.f32 %v170, %v445
    %v447 = vpop.f32.mrb[0].mxu0
    %v448 = vpop.f32.mrb[0].mxu0
    %v449 = vadd.f32 %v170, %v448
    %v450 = vpop.f32.mrb[0].mxu0
    %451 = vmatprep.mubr.bf16.mxu0 0
    %452 = vmatmul.mubr.bf16.gmra.mrb[0].mxu0 %v300
    %v453 = vpop.f32.mrb[0].mxu0
    %v454 = vadd.f32 %v170, %v453
    %v455 = vpop.f32.mrb[0].mxu0
    %v456 = vpop.f32.mrb[0].mxu0
    %v457 = vadd.f32 %v170, %v456
    %v458 = vpop.f32.mrb[0].mxu0
    %459 = vmatprep.mubr.bf16.mxu0 0
    %460 = vmatmul.mubr.bf16.gmra.mrb[0].mxu0 %v301
    %v461 = vpop.f32.mrb[0].mxu0
    %v462 = vadd.f32 %v170, %v461
    %v463 = vpop.f32.mrb[0].mxu0
    %v464 = vpop.f32.mrb[0].mxu0
    %v465 = vadd.f32 %v170, %v464
    %v466 = vpop.f32.mrb[0].mxu0
    %467 = vmatprep.mubr.bf16.mxu0 0
    %468 = vmatmul.mubr.bf16.gmra.mrb[0].mxu0 %v302
    %v469 = vpop.f32.mrb[0].mxu0
    %v470 = vadd.f32 %v170, %v469
    %v471 = vpop.f32.mrb[0].mxu0
    %v472 = vpop.f32.mrb[0].mxu0
    %v473 = vadd.f32 %v170, %v472
    %v474 = vpop.f32.mrb[0].mxu0
    %475 = vmatprep.mubr.bf16.mxu0 0
    %476 = vmatmul.mubr.bf16.gmra.mrb[0].mxu0 %v303
    %v477 = vpop.f32.mrb[0].mxu0
    %v478 = vadd.f32 %v170, %v477
    %v479 = vpop.f32.mrb[0].mxu0
    %v480 = vpop.f32.mrb[0].mxu0
    %v481 = vadd.f32 %v170, %v480
    %v482 = vpop.f32.mrb[0].mxu0
    %483 = vmatprep.mubr.bf16.mxu0 0
    %484 = vmatmul.mubr.bf16.gmra.mrb[0].mxu0 %v304
    %v485 = vpop.f32.mrb[0].mxu0
    %v486 = vadd.f32 %v170, %v485
    %v487 = vpop.f32.mrb[0].mxu0
    %v488 = vpop.f32.mrb[0].mxu0
    %v489 = vadd.f32 %v170, %v488
    %v490 = vpop.f32.mrb[0].mxu0
    %491 = vmatprep.mubr.bf16.mxu0 0
    %492 = vmatmul.mubr.bf16.gmra.mrb[0].mxu0 %v305
    %v493 = vpop.f32.mrb[0].mxu0
    %v494 = vadd.f32 %v170, %v493
    %v495 = vpop.f32.mrb[0].mxu0
    %v496 = vpop.f32.mrb[0].mxu0
    %v497 = vadd.f32 %v170, %v496
    %v498 = vpop.f32.mrb[0].mxu0
    %499 = vmatprep.mubr.bf16.mxu0 0
    %500 = vmatmul.mubr.bf16.gmra.mrb[0].mxu0 %v306
    %v501 = vpop.f32.mrb[0].mxu0
    %v502 = vadd.f32 %v170, %v501
    %v503 = vpop.f32.mrb[0].mxu0
    %v504 = vpop.f32.mrb[0].mxu0
    %v505 = vadd.f32 %v170, %v504
    %v506 = vpop.f32.mrb[0].mxu0
    %507 = vmatprep.mubr.bf16.mxu0 0
    %508 = vmatmul.mubr.bf16.gmra.mrb[0].mxu0 %v307
    %v509 = vpop.f32.mrb[0].mxu0
    %v510 = vadd.f32 %v170, %v509
    %v511 = vpop.f32.mrb[0].mxu0
    %v512 = vpop.f32.mrb[0].mxu0
    %v513 = vadd.f32 %v170, %v512
    %v514 = vpop.f32.mrb[0].mxu0
    %515 = vmatprep.mubr.bf16.mxu0 0
    %516 = vmatmul.mubr.bf16.gmra.mrb[0].mxu0 %v308
    %v517 = vpop.f32.mrb[0].mxu0
    %v518 = vadd.f32 %v170, %v517
    %v519 = vpop.f32.mrb[0].mxu0
    %v520 = vpop.f32.mrb[0].mxu0
    %v521 = vadd.f32 %v170, %v520
    %v522 = vpop.f32.mrb[0].mxu0
    %523 = vmatprep.mubr.bf16.mxu0 0
    %524 = vmatmul.mubr.bf16.gmra.mrb[0].mxu0 %v309
    %v525 = vpop.f32.mrb[0].mxu0
    %v526 = vadd.f32 %v170, %v525
    %v527 = vpop.f32.mrb[0].mxu0
    %v528 = vpop.f32.mrb[0].mxu0
    %v529 = vadd.f32 %v170, %v528
    %v530 = vpop.f32.mrb[0].mxu0
    %531 = vmatprep.mubr.bf16.mxu0 0
    %532 = vmatmul.mubr.bf16.gmra.mrb[0].mxu0 %v310
    %v533 = vpop.f32.mrb[0].mxu0
    %v534 = vadd.f32 %v170, %v533
    %v535 = vpop.f32.mrb[0].mxu0
    %v536 = vpop.f32.mrb[0].mxu0
    %v537 = vadd.f32 %v170, %v536
    %v538 = vpop.f32.mrb[0].mxu0
    %539 = vmatprep.mubr.bf16.mxu0 0
    %540 = vmatmul.mubr.bf16.gmra.mrb[0].mxu0 %v311
    %v541 = vpop.f32.mrb[0].mxu0
    %v542 = vadd.f32 %v170, %v541
    %v543 = vpop.f32.mrb[0].mxu0
    %v544 = vpop.f32.mrb[0].mxu0
    %v545 = vadd.f32 %v170, %v544
    %v546 = vpop.f32.mrb[0].mxu0
    %547 = vmatprep.mubr.bf16.mxu0 0
    %548 = vmatmul.mubr.bf16.gmra.mrb[0].mxu0 %v312
    %v549 = vpop.f32.mrb[0].mxu0
    %v550 = vadd.f32 %v170, %v549
    %v551 = vpop.f32.mrb[0].mxu0
    %v552 = vpop.f32.mrb[0].mxu0
    %v553 = vadd.f32 %v170, %v552
    %v554 = vpop.f32.mrb[0].mxu0
    %555 = vmatprep.mubr.bf16.mxu0 0
    %556 = vmatmul.mubr.bf16.gmra.mrb[0].mxu0 %v313
    %v557 = vpop.f32.mrb[0].mxu0
    %v558 = vadd.f32 %v170, %v557
    %v559 = vpop.f32.mrb[0].mxu0
    %v560 = vpop.f32.mrb[0].mxu0
    %v561 = vadd.f32 %v170, %v560
    %v562 = vpop.f32.mrb[0].mxu0
    %563 = vmatprep.mubr.bf16.mxu0 0
    %564 = vmatmul.mubr.bf16.gmra.mrb[0].mxu0 %v314
    %v565 = vpop.f32.mrb[0].mxu0
    %v566 = vadd.f32 %v170, %v565
    %v567 = vpop.f32.mrb[0].mxu0
    %v568 = vpop.f32.mrb[0].mxu0
    %v569 = vadd.f32 %v170, %v568
    %v570 = vpop.f32.mrb[0].mxu0
    %571 = vmatprep.mubr.bf16.mxu0 0
    %572 = vmatmul.mubr.bf16.gmra.mrb[0].mxu0 %v315
    %v573 = vpop.f32.mrb[0].mxu0
    %v574 = vadd.f32 %v170, %v573
    %v575 = vpop.f32.mrb[0].mxu0
    %v576 = vpop.f32.mrb[0].mxu0
    %v577 = vadd.f32 %v170, %v576
    %v578 = vpop.f32.mrb[0].mxu0
    %579 = vmatprep.mubr.bf16.mxu0 0
    %580 = vmatmul.mubr.bf16.gmra.mrb[0].mxu0 %v316
    %v581 = vpop.f32.mrb[0].mxu0
    %v582 = vadd.f32 %v170, %v581
    %v583 = vpop.f32.mrb[0].mxu0
    %v584 = vpop.f32.mrb[0].mxu0
    %v585 = vadd.f32 %v170, %v584
    %v586 = vpop.f32.mrb[0].mxu0
    %587 = vmatprep.mubr.bf16.mxu0 0
    %588 = vmatmul.mubr.bf16.gmra.mrb[0].mxu0 %v317
    %v589 = vpop.f32.mrb[0].mxu0
    %v590 = vadd.f32 %v170, %v589
    %v591 = vpop.f32.mrb[0].mxu0
    %v592 = vpop.f32.mrb[0].mxu0
    %v593 = vadd.f32 %v170, %v592
    %v594 = vpop.f32.mrb[0].mxu0
    %595 = vmatprep.mubr.bf16.mxu0 0
    %596 = vmatmul.mubr.bf16.gmra.mrb[0].mxu0 %v318
    %v597 = vpop.f32.mrb[0].mxu0
    %v598 = vadd.f32 %v170, %v597
    %v599 = vpop.f32.mrb[0].mxu0
    %v600 = vpop.f32.mrb[0].mxu0
    %v601 = vadd.f32 %v170, %v600
    %v602 = vpop.f32.mrb[0].mxu0
    %603 = vmatprep.mubr.bf16.mxu0 0
    %604 = vmatmul.mubr.bf16.gmra.mrb[0].mxu0 %v319
    %v605 = vpop.f32.mrb[0].mxu0
    %v606 = vadd.f32 %v170, %v605
    %v607 = vpop.f32.mrb[0].mxu0
    %v608 = vpop.f32.mrb[0].mxu0
    %v609 = vadd.f32 %v170, %v608
    %v610 = vpop.f32.mrb[0].mxu0
    %611 = vmatprep.mubr.bf16.mxu0 0
    %612 = vmatmul.mubr.bf16.gmra.mrb[0].mxu0 %v320
    %v613 = vpop.f32.mrb[0].mxu0
    %v614 = vadd.f32 %v170, %v613
    %v615 = vpop.f32.mrb[0].mxu0
    %v616 = vpop.f32.mrb[0].mxu0
    %v617 = vadd.f32 %v170, %v616
    %v618 = vpop.f32.mrb[0].mxu0
    %619 = vmatprep.mubr.bf16.mxu0 0
    %620 = vmatmul.mubr.bf16.gmra.mrb[0].mxu0 %v321
    %v621 = vpop.f32.mrb[0].mxu0
    %v622 = vadd.f32 %v170, %v621
    %v623 = vpop.f32.mrb[0].mxu0
    %v624 = vpop.f32.mrb[0].mxu0
    %v625 = vadd.f32 %v170, %v624
    %v626 = vpop.f32.mrb[0].mxu0
    %627 = vmatprep.mubr.bf16.mxu0 0
    %628 = vmatmul.mubr.bf16.gmra.mrb[0].mxu0 %v322
    %v629 = vpop.f32.mrb[0].mxu0
    %v630 = vadd.f32 %v170, %v629
    %v631 = vpop.f32.mrb[0].mxu0
    %v632 = vpop.f32.mrb[0].mxu0
    %v633 = vadd.f32 %v170, %v632
    %v634 = vpop.f32.mrb[0].mxu0
    %635 = vmatprep.mubr.bf16.mxu0 0
    %636 = vmatmul.mubr.bf16.gmra.mrb[0].mxu0 %v323
    %v637 = vpop.f32.mrb[0].mxu0
    %v638 = vadd.f32 %v170, %v637
    %v639 = vpop.f32.mrb[0].mxu0
    %v640 = vpop.f32.mrb[0].mxu0
    %v641 = vadd.f32 %v170, %v640
    %v642 = vpop.f32.mrb[0].mxu0
    %643 = vmatprep.mubr.bf16.mxu0 0
    %644 = vmatmul.mubr.bf16.gmra.mrb[0].mxu0 %v324
    %v645 = vpop.f32.mrb[0].mxu0
    %v646 = vadd.f32 %v170, %v645
    %v647 = vpop.f32.mrb[0].mxu0
    %v648 = vpop.f32.mrb[0].mxu0
    %v649 = vadd.f32 %v170, %v648
    %v650 = vpop.f32.mrb[0].mxu0
    %651 = vmatprep.mubr.bf16.mxu0 0
    %652 = vmatmul.mubr.bf16.gmra.mrb[0].mxu0 %v325
    %v653 = vpop.f32.mrb[0].mxu0
    %v654 = vadd.f32 %v170, %v653
    %v655 = vpop.f32.mrb[0].mxu0
    %v656 = vpop.f32.mrb[0].mxu0
    %v657 = vadd.f32 %v170, %v656
    %v658 = vpop.f32.mrb[0].mxu0
    %659 = vmatprep.mubr.bf16.mxu0 0
    %660 = vmatmul.mubr.bf16.gmra.mrb[0].mxu0 %v326
    %v661 = vpop.f32.mrb[0].mxu0
    %v662 = vadd.f32 %v170, %v661
    %v663 = vpop.f32.mrb[0].mxu0
    %v664 = vpop.f32.mrb[0].mxu0
    %v665 = vadd.f32 %v170, %v664
    %v666 = vpop.f32.mrb[0].mxu0
    %667 = vmatprep.mubr.bf16.mxu0 0
    %668 = vmatmul.mubr.bf16.gmra.mrb[0].mxu0 %v327
    %v669 = vpop.f32.mrb[0].mxu0
    %v670 = vadd.f32 %v170, %v669
    %v671 = vpop.f32.mrb[0].mxu0
    %v672 = vpop.f32.mrb[0].mxu0
    %v673 = vadd.f32 %v170, %v672
    %v674 = vpop.f32.mrb[0].mxu0
    %675 = vmatprep.mubr.bf16.mxu0 0
    %676 = vmatmul.mubr.bf16.gmra.mrb[0].mxu0 %v328
    %v677 = vpop.f32.mrb[0].mxu0
    %v678 = vadd.f32 %v170, %v677
    %v679 = vpop.f32.mrb[0].mxu0
    %v680 = vpop.f32.mrb[0].mxu0
    %v681 = vadd.f32 %v170, %v680
    %v682 = vpop.f32.mrb[0].mxu0
    %683 = vmatprep.mubr.bf16.mxu0 0
    %684 = vmatmul.mubr.bf16.gmra.mrb[0].mxu0 %v329
    %v685 = vpop.f32.mrb[0].mxu0
    %v686 = vadd.f32 %v170, %v685
    %v687 = vpop.f32.mrb[0].mxu0
    %v688 = vpop.f32.mrb[0].mxu0
    %v689 = vadd.f32 %v170, %v688
    %v690 = vpop.f32.mrb[0].mxu0
    %691 = vmatprep.mubr.bf16.mxu0 0
    %692 = vmatmul.mubr.bf16.gmra.mrb[0].mxu0 %v330
    %v693 = vpop.f32.mrb[0].mxu0
    %v694 = vadd.f32 %v170, %v693
    %v695 = vpop.f32.mrb[0].mxu0
    %v696 = vpop.f32.mrb[0].mxu0
    %v697 = vadd.f32 %v170, %v696
    %v698 = vpop.f32.mrb[0].mxu0
    %699 = vdwg.mxu0
    %v700 = vxor.u32 %v446, 2147483648
    %v701 = vxor.u32 %v449, 2147483648
    %v702 = vxor.u32 %v454, 2147483648
    %v703 = vxor.u32 %v457, 2147483648
    %v704 = vxor.u32 %v462, 2147483648
    %v705 = vxor.u32 %v465, 2147483648
    %v706 = vxor.u32 %v470, 2147483648
    %v707 = vxor.u32 %v473, 2147483648
    %v708 = vxor.u32 %v478, 2147483648
    %v709 = vxor.u32 %v481, 2147483648
    %v710 = vxor.u32 %v486, 2147483648
    %v711 = vxor.u32 %v489, 2147483648
    %v712 = vxor.u32 %v494, 2147483648
    %v713 = vxor.u32 %v497, 2147483648
    %v714 = vxor.u32 %v502, 2147483648
    %v715 = vxor.u32 %v505, 2147483648
    %v716 = vxor.u32 %v510, 2147483648
    %v717 = vxor.u32 %v513, 2147483648
    %v718 = vxor.u32 %v518, 2147483648
    %v719 = vxor.u32 %v521, 2147483648
    %v720 = vxor.u32 %v526, 2147483648
    %v721 = vxor.u32 %v529, 2147483648
    %v722 = vxor.u32 %v534, 2147483648
    %v723 = vxor.u32 %v537, 2147483648
    %v724 = vxor.u32 %v542, 2147483648
    %v725 = vxor.u32 %v545, 2147483648
    %v726 = vxor.u32 %v550, 2147483648
    %v727 = vxor.u32 %v553, 2147483648
    %v728 = vxor.u32 %v558, 2147483648
    %v729 = vxor.u32 %v561, 2147483648
    %v730 = vxor.u32 %v566, 2147483648
    %v731 = vxor.u32 %v569, 2147483648
    %v732 = vxor.u32 %v574, 2147483648
    %v733 = vxor.u32 %v577, 2147483648
    %v734 = vxor.u32 %v582, 2147483648
    %v735 = vxor.u32 %v585, 2147483648
    %v736 = vxor.u32 %v590, 2147483648
    %v737 = vxor.u32 %v593, 2147483648
    %v738 = vxor.u32 %v598, 2147483648
    %v739 = vxor.u32 %v601, 2147483648
    %v740 = vxor.u32 %v606, 2147483648
    %v741 = vxor.u32 %v609, 2147483648
    %v742 = vxor.u32 %v614, 2147483648
    %v743 = vxor.u32 %v617, 2147483648
    %v744 = vxor.u32 %v622, 2147483648
    %v745 = vxor.u32 %v625, 2147483648
    %v746 = vxor.u32 %v630, 2147483648
    %v747 = vxor.u32 %v633, 2147483648
    %v748 = vxor.u32 %v638, 2147483648
    %v749 = vxor.u32 %v641, 2147483648
    %v750 = vxor.u32 %v646, 2147483648
    %v751 = vxor.u32 %v649, 2147483648
    %v752 = vxor.u32 %v654, 2147483648
    %v753 = vxor.u32 %v657, 2147483648
    %v754 = vxor.u32 %v662, 2147483648
    %v755 = vxor.u32 %v665, 2147483648
    %v756 = vxor.u32 %v670, 2147483648
    %v757 = vxor.u32 %v673, 2147483648
    %v758 = vxor.u32 %v678, 2147483648
    %v759 = vxor.u32 %v681, 2147483648
    %v760 = vxor.u32 %v686, 2147483648
    %v761 = vxor.u32 %v689, 2147483648
    %v762 = vxor.u32 %v694, 2147483648
    %v763 = vxor.u32 %v697, 2147483648
    %v764 = vmul.f32 %v700, 1.442695
    %v765 = vpow.pop %v764
    %v766 = vmul.f32 %v701, 1.442695
    %v767 = vpow.pop %v766
    %v768 = vmul.f32 %v702, 1.442695
    %v769 = vpow.pop %v768
    %v770 = vmul.f32 %v703, 1.442695
    %v771 = vpow.pop %v770
    %v772 = vmul.f32 %v704, 1.442695
    %v773 = vpow.pop %v772
    %v774 = vmul.f32 %v705, 1.442695
    %v775 = vpow.pop %v774
    %v776 = vmul.f32 %v706, 1.442695
    %v777 = vpow.pop %v776
    %v778 = vmul.f32 %v707, 1.442695
    %v779 = vpow.pop %v778
    %v780 = vmul.f32 %v708, 1.442695
    %v781 = vpow.pop %v780
    %v782 = vmul.f32 %v709, 1.442695
    %v783 = vpow.pop %v782
    %v784 = vmul.f32 %v710, 1.442695
    %v785 = vpow.pop %v784
    %v786 = vmul.f32 %v711, 1.442695
    %v787 = vpow.pop %v786
    %v788 = vmul.f32 %v712, 1.442695
    %v789 = vpow.pop %v788
    %v790 = vmul.f32 %v713, 1.442695
    %v791 = vpow.pop %v790
    %v792 = vmul.f32 %v714, 1.442695
    %v793 = vpow.pop %v792
    %v794 = vmul.f32 %v715, 1.442695
    %v795 = vpow.pop %v794
    %v796 = vmul.f32 %v716, 1.442695
    %v797 = vpow.pop %v796
    %v798 = vmul.f32 %v717, 1.442695
    %v799 = vpow.pop %v798
    %v800 = vmul.f32 %v718, 1.442695
    %v801 = vpow.pop %v800
    %v802 = vmul.f32 %v719, 1.442695
    %v803 = vpow.pop %v802
    %v804 = vmul.f32 %v720, 1.442695
    %v805 = vpow.pop %v804
    %v806 = vmul.f32 %v721, 1.442695
    %v807 = vpow.pop %v806
    %v808 = vmul.f32 %v722, 1.442695
    %v809 = vpow.pop %v808
    %v810 = vmul.f32 %v723, 1.442695
    %v811 = vpow.pop %v810
    %v812 = vmul.f32 %v724, 1.442695
    %v813 = vpow.pop %v812
    %v814 = vmul.f32 %v725, 1.442695
    %v815 = vpow.pop %v814
    %v816 = vmul.f32 %v726, 1.442695
    %v817 = vpow.pop %v816
    %v818 = vmul.f32 %v727, 1.442695
    %v819 = vpow.pop %v818
    %v820 = vmul.f32 %v728, 1.442695
    %v821 = vpow.pop %v820
    %v822 = vmul.f32 %v729, 1.442695
    %v823 = vpow.pop %v822
    %v824 = vmul.f32 %v730, 1.442695
    %v825 = vpow.pop %v824
    %v826 = vmul.f32 %v731, 1.442695
    %v827 = vpow.pop %v826
    %v828 = vmul.f32 %v732, 1.442695
    %v829 = vpow.pop %v828
    %v830 = vmul.f32 %v733, 1.442695
    %v831 = vpow.pop %v830
    %v832 = vmul.f32 %v734, 1.442695
    %v833 = vpow.pop %v832
    %v834 = vmul.f32 %v735, 1.442695
    %v835 = vpow.pop %v834
    %v836 = vmul.f32 %v736, 1.442695
    %v837 = vpow.pop %v836
    %v838 = vmul.f32 %v737, 1.442695
    %v839 = vpow.pop %v838
    %v840 = vmul.f32 %v738, 1.442695
    %v841 = vpow.pop %v840
    %v842 = vmul.f32 %v739, 1.442695
    %v843 = vpow.pop %v842
    %v844 = vmul.f32 %v740, 1.442695
    %v845 = vpow.pop %v844
    %v846 = vmul.f32 %v741, 1.442695
    %v847 = vpow.pop %v846
    %v848 = vmul.f32 %v742, 1.442695
    %v849 = vpow.pop %v848
    %v850 = vmul.f32 %v743, 1.442695
    %v851 = vpow.pop %v850
    %v852 = vmul.f32 %v744, 1.442695
    %v853 = vpow.pop %v852
    %v854 = vmul.f32 %v745, 1.442695
    %v855 = vpow.pop %v854
    %v856 = vmul.f32 %v746, 1.442695
    %v857 = vpow.pop %v856
    %v858 = vmul.f32 %v747, 1.442695
    %v859 = vpow.pop %v858
    %v860 = vmul.f32 %v748, 1.442695
    %v861 = vpow.pop %v860
    %v862 = vmul.f32 %v749, 1.442695
    %v863 = vpow.pop %v862
    %v864 = vmul.f32 %v750, 1.442695
    %v865 = vpow.pop %v864
    %v866 = vmul.f32 %v751, 1.442695
    %v867 = vpow.pop %v866
    %v868 = vmul.f32 %v752, 1.442695
    %v869 = vpow.pop %v868
    %v870 = vmul.f32 %v753, 1.442695
    %v871 = vpow.pop %v870
    %v872 = vmul.f32 %v754, 1.442695
    %v873 = vpow.pop %v872
    %v874 = vmul.f32 %v755, 1.442695
    %v875 = vpow.pop %v874
    %v876 = vmul.f32 %v756, 1.442695
    %v877 = vpow.pop %v876
    %v878 = vmul.f32 %v757, 1.442695
    %v879 = vpow.pop %v878
    %v880 = vmul.f32 %v758, 1.442695
    %v881 = vpow.pop %v880
    %v882 = vmul.f32 %v759, 1.442695
    %v883 = vpow.pop %v882
    %v884 = vmul.f32 %v760, 1.442695
    %v885 = vpow.pop %v884
    %v886 = vmul.f32 %v761, 1.442695
    %v887 = vpow.pop %v886
    %v888 = vmul.f32 %v762, 1.442695
    %v889 = vpow.pop %v888
    %v890 = vmul.f32 %v763, 1.442695
    %v891 = vpow.pop %v890
    %v892 = vadd.f32 %v765, 1.0
    %v893 = vadd.f32 %v767, 1.0
    %v894 = vadd.f32 %v769, 1.0
    %v895 = vadd.f32 %v771, 1.0
    %v896 = vadd.f32 %v773, 1.0
    %v897 = vadd.f32 %v775, 1.0
    %v898 = vadd.f32 %v777, 1.0
    %v899 = vadd.f32 %v779, 1.0
    %v900 = vadd.f32 %v781, 1.0
    %v901 = vadd.f32 %v783, 1.0
    %v902 = vadd.f32 %v785, 1.0
    %v903 = vadd.f32 %v787, 1.0
    %v904 = vadd.f32 %v789, 1.0
    %v905 = vadd.f32 %v791, 1.0
    %v906 = vadd.f32 %v793, 1.0
    %v907 = vadd.f32 %v795, 1.0
    %v908 = vadd.f32 %v797, 1.0
    %v909 = vadd.f32 %v799, 1.0
    %v910 = vadd.f32 %v801, 1.0
    %v911 = vadd.f32 %v803, 1.0
    %v912 = vadd.f32 %v805, 1.0
    %v913 = vadd.f32 %v807, 1.0
    %v914 = vadd.f32 %v809, 1.0
    %v915 = vadd.f32 %v811, 1.0
    %v916 = vadd.f32 %v813, 1.0
    %v917 = vadd.f32 %v815, 1.0
    %v918 = vadd.f32 %v817, 1.0
    %v919 = vadd.f32 %v819, 1.0
    %v920 = vadd.f32 %v821, 1.0
    %v921 = vadd.f32 %v823, 1.0
    %v922 = vadd.f32 %v825, 1.0
    %v923 = vadd.f32 %v827, 1.0
    %v924 = vadd.f32 %v829, 1.0
    %v925 = vadd.f32 %v831, 1.0
    %v926 = vadd.f32 %v833, 1.0
    %v927 = vadd.f32 %v835, 1.0
    %v928 = vadd.f32 %v837, 1.0
    %v929 = vadd.f32 %v839, 1.0
    %v930 = vadd.f32 %v841, 1.0
    %v931 = vadd.f32 %v843, 1.0
    %v932 = vadd.f32 %v845, 1.0
    %v933 = vadd.f32 %v847, 1.0
    %v934 = vadd.f32 %v849, 1.0
    %v935 = vadd.f32 %v851, 1.0
    %v936 = vadd.f32 %v853, 1.0
    %v937 = vadd.f32 %v855, 1.0
    %v938 = vadd.f32 %v857, 1.0
    %v939 = vadd.f32 %v859, 1.0
    %v940 = vadd.f32 %v861, 1.0
    %v941 = vadd.f32 %v863, 1.0
    %v942 = vadd.f32 %v865, 1.0
    %v943 = vadd.f32 %v867, 1.0
    %v944 = vadd.f32 %v869, 1.0
    %v945 = vadd.f32 %v871, 1.0
    %v946 = vadd.f32 %v873, 1.0
    %v947 = vadd.f32 %v875, 1.0
    %v948 = vadd.f32 %v877, 1.0
    %v949 = vadd.f32 %v879, 1.0
    %v950 = vadd.f32 %v881, 1.0
    %v951 = vadd.f32 %v883, 1.0
    %v952 = vadd.f32 %v885, 1.0
    %v953 = vadd.f32 %v887, 1.0
    %v954 = vadd.f32 %v889, 1.0
    %v955 = vadd.f32 %v891, 1.0
    %v956 = vrcp.pop %v892
    %v957 = vmul.f32 1.0, %v956
    %v958 = vrcp.pop %v893
    %v959 = vmul.f32 1.0, %v958
    %v960 = vrcp.pop %v894
    %v961 = vmul.f32 1.0, %v960
    %v962 = vrcp.pop %v895
    %v963 = vmul.f32 1.0, %v962
    %v964 = vrcp.pop %v896
    %v965 = vmul.f32 1.0, %v964
    %v966 = vrcp.pop %v897
    %v967 = vmul.f32 1.0, %v966
    %v968 = vrcp.pop %v898
    %v969 = vmul.f32 1.0, %v968
    %v970 = vrcp.pop %v899
    %v971 = vmul.f32 1.0, %v970
    %v972 = vrcp.pop %v900
    %v973 = vmul.f32 1.0, %v972
    %v974 = vrcp.pop %v901
    %v975 = vmul.f32 1.0, %v974
    %v976 = vrcp.pop %v902
    %v977 = vmul.f32 1.0, %v976
    %v978 = vrcp.pop %v903
    %v979 = vmul.f32 1.0, %v978
    %v980 = vrcp.pop %v904
    %v981 = vmul.f32 1.0, %v980
    %v982 = vrcp.pop %v905
    %v983 = vmul.f32 1.0, %v982
    %v984 = vrcp.pop %v906
    %v985 = vmul.f32 1.0, %v984
    %v986 = vrcp.pop %v907
    %v987 = vmul.f32 1.0, %v986
    %v988 = vrcp.pop %v908
    %v989 = vmul.f32 1.0, %v988
    %v990 = vrcp.pop %v909
    %v991 = vmul.f32 1.0, %v990
    %v992 = vrcp.pop %v910
    %v993 = vmul.f32 1.0, %v992
    %v994 = vrcp.pop %v911
    %v995 = vmul.f32 1.0, %v994
    %v996 = vrcp.pop %v912
    %v997 = vmul.f32 1.0, %v996
    %v998 = vrcp.pop %v913
    %v999 = vmul.f32 1.0, %v998
    %v1000 = vrcp.pop %v914
    %v1001 = vmul.f32 1.0, %v1000
    %v1002 = vrcp.pop %v915
    %v1003 = vmul.f32 1.0, %v1002
    %v1004 = vrcp.pop %v916
    %v1005 = vmul.f32 1.0, %v1004
    %v1006 = vrcp.pop %v917
    %v1007 = vmul.f32 1.0, %v1006
    %v1008 = vrcp.pop %v918
    %v1009 = vmul.f32 1.0, %v1008
    %v1010 = vrcp.pop %v919
    %v1011 = vmul.f32 1.0, %v1010
    %v1012 = vrcp.pop %v920
    %v1013 = vmul.f32 1.0, %v1012
    %v1014 = vrcp.pop %v921
    %v1015 = vmul.f32 1.0, %v1014
    %v1016 = vrcp.pop %v922
    %v1017 = vmul.f32 1.0, %v1016
    %v1018 = vrcp.pop %v923
    %v1019 = vmul.f32 1.0, %v1018
    %v1020 = vrcp.pop %v924
    %v1021 = vmul.f32 1.0, %v1020
    %v1022 = vrcp.pop %v925
    %v1023 = vmul.f32 1.0, %v1022
    %v1024 = vrcp.pop %v926
    %v1025 = vmul.f32 1.0, %v1024
    %v1026 = vrcp.pop %v927
    %v1027 = vmul.f32 1.0, %v1026
    %v1028 = vrcp.pop %v928
    %v1029 = vmul.f32 1.0, %v1028
    %v1030 = vrcp.pop %v929
    %v1031 = vmul.f32 1.0, %v1030
    %v1032 = vrcp.pop %v930
    %v1033 = vmul.f32 1.0, %v1032
    %v1034 = vrcp.pop %v931
    %v1035 = vmul.f32 1.0, %v1034
    %v1036 = vrcp.pop %v932
    %v1037 = vmul.f32 1.0, %v1036
    %v1038 = vrcp.pop %v933
    %v1039 = vmul.f32 1.0, %v1038
    %v1040 = vrcp.pop %v934
    %v1041 = vmul.f32 1.0, %v1040
    %v1042 = vrcp.pop %v935
    %v1043 = vmul.f32 1.0, %v1042
    %v1044 = vrcp.pop %v936
    %v1045 = vmul.f32 1.0, %v1044
    %v1046 = vrcp.pop %v937
    %v1047 = vmul.f32 1.0, %v1046
    %v1048 = vrcp.pop %v938
    %v1049 = vmul.f32 1.0, %v1048
    %v1050 = vrcp.pop %v939
    %v1051 = vmul.f32 1.0, %v1050
    %v1052 = vrcp.pop %v940
    %v1053 = vmul.f32 1.0, %v1052
    %v1054 = vrcp.pop %v941
    %v1055 = vmul.f32 1.0, %v1054
    %v1056 = vrcp.pop %v942
    %v1057 = vmul.f32 1.0, %v1056
    %v1058 = vrcp.pop %v943
    %v1059 = vmul.f32 1.0, %v1058
    %v1060 = vrcp.pop %v944
    %v1061 = vmul.f32 1.0, %v1060
    %v1062 = vrcp.pop %v945
    %v1063 = vmul.f32 1.0, %v1062
    %v1064 = vrcp.pop %v946
    %v1065 = vmul.f32 1.0, %v1064
    %v1066 = vrcp.pop %v947
    %v1067 = vmul.f32 1.0, %v1066
    %v1068 = vrcp.pop %v948
    %v1069 = vmul.f32 1.0, %v1068
    %v1070 = vrcp.pop %v949
    %v1071 = vmul.f32 1.0, %v1070
    %v1072 = vrcp.pop %v950
    %v1073 = vmul.f32 1.0, %v1072
    %v1074 = vrcp.pop %v951
    %v1075 = vmul.f32 1.0, %v1074
    %v1076 = vrcp.pop %v952
    %v1077 = vmul.f32 1.0, %v1076
    %v1078 = vrcp.pop %v953
    %v1079 = vmul.f32 1.0, %v1078
    %v1080 = vrcp.pop %v954
    %v1081 = vmul.f32 1.0, %v1080
    %v1082 = vrcp.pop %v955
    %v1083 = vmul.f32 1.0, %v1082
    %v1084 = vmul.f32 %v446, %v957
    %v1085 = vmul.f32 %v449, %v959
    %v1086 = vmul.f32 %v454, %v961
    %v1087 = vmul.f32 %v457, %v963
    %v1088 = vmul.f32 %v462, %v965
    %v1089 = vmul.f32 %v465, %v967
    %v1090 = vmul.f32 %v470, %v969
    %v1091 = vmul.f32 %v473, %v971
    %v1092 = vmul.f32 %v478, %v973
    %v1093 = vmul.f32 %v481, %v975
    %v1094 = vmul.f32 %v486, %v977
    %v1095 = vmul.f32 %v489, %v979
    %v1096 = vmul.f32 %v494, %v981
    %v1097 = vmul.f32 %v497, %v983
    %v1098 = vmul.f32 %v502, %v985
    %v1099 = vmul.f32 %v505, %v987
    %v1100 = vmul.f32 %v510, %v989
    %v1101 = vmul.f32 %v513, %v991
    %v1102 = vmul.f32 %v518, %v993
    %v1103 = vmul.f32 %v521, %v995
    %v1104 = vmul.f32 %v526, %v997
    %v1105 = vmul.f32 %v529, %v999
    %v1106 = vmul.f32 %v534, %v1001
    %v1107 = vmul.f32 %v537, %v1003
    %v1108 = vmul.f32 %v542, %v1005
    %v1109 = vmul.f32 %v545, %v1007
    %v1110 = vmul.f32 %v550, %v1009
    %v1111 = vmul.f32 %v553, %v1011
    %v1112 = vmul.f32 %v558, %v1013
    %v1113 = vmul.f32 %v561, %v1015
    %v1114 = vmul.f32 %v566, %v1017
    %v1115 = vmul.f32 %v569, %v1019
    %v1116 = vmul.f32 %v574, %v1021
    %v1117 = vmul.f32 %v577, %v1023
    %v1118 = vmul.f32 %v582, %v1025
    %v1119 = vmul.f32 %v585, %v1027
    %v1120 = vmul.f32 %v590, %v1029
    %v1121 = vmul.f32 %v593, %v1031
    %v1122 = vmul.f32 %v598, %v1033
    %v1123 = vmul.f32 %v601, %v1035
    %v1124 = vmul.f32 %v606, %v1037
    %v1125 = vmul.f32 %v609, %v1039
    %v1126 = vmul.f32 %v614, %v1041
    %v1127 = vmul.f32 %v617, %v1043
    %v1128 = vmul.f32 %v622, %v1045
    %v1129 = vmul.f32 %v625, %v1047
    %v1130 = vmul.f32 %v630, %v1049
    %v1131 = vmul.f32 %v633, %v1051
    %v1132 = vmul.f32 %v638, %v1053
    %v1133 = vmul.f32 %v641, %v1055
    %v1134 = vmul.f32 %v646, %v1057
    %v1135 = vmul.f32 %v649, %v1059
    %v1136 = vmul.f32 %v654, %v1061
    %v1137 = vmul.f32 %v657, %v1063
    %v1138 = vmul.f32 %v662, %v1065
    %v1139 = vmul.f32 %v665, %v1067
    %v1140 = vmul.f32 %v670, %v1069
    %v1141 = vmul.f32 %v673, %v1071
    %v1142 = vmul.f32 %v678, %v1073
    %v1143 = vmul.f32 %v681, %v1075
    %v1144 = vmul.f32 %v686, %v1077
    %v1145 = vmul.f32 %v689, %v1079
    %v1146 = vmul.f32 %v694, %v1081
    %v1147 = vmul.f32 %v697, %v1083
    %v1148 = vpack.c.bf16 %v1085, %v1084
    %v1149 = vpack.c.bf16 %v1087, %v1086
    %v1150 = vpack.c.bf16 %v1089, %v1088
    %v1151 = vpack.c.bf16 %v1091, %v1090
    %v1152 = vpack.c.bf16 %v1093, %v1092
    %v1153 = vpack.c.bf16 %v1095, %v1094
    %v1154 = vpack.c.bf16 %v1097, %v1096
    %v1155 = vpack.c.bf16 %v1099, %v1098
    %v1156 = vpack.c.bf16 %v1101, %v1100
    %v1157 = vpack.c.bf16 %v1103, %v1102
    %v1158 = vpack.c.bf16 %v1105, %v1104
    %v1159 = vpack.c.bf16 %v1107, %v1106
    %v1160 = vpack.c.bf16 %v1109, %v1108
    %v1161 = vpack.c.bf16 %v1111, %v1110
    %v1162 = vpack.c.bf16 %v1113, %v1112
    %v1163 = vpack.c.bf16 %v1115, %v1114
    %v1164 = vpack.c.bf16 %v1117, %v1116
    %v1165 = vpack.c.bf16 %v1119, %v1118
    %v1166 = vpack.c.bf16 %v1121, %v1120
    %v1167 = vpack.c.bf16 %v1123, %v1122
    %v1168 = vpack.c.bf16 %v1125, %v1124
    %v1169 = vpack.c.bf16 %v1127, %v1126
    %v1170 = vpack.c.bf16 %v1129, %v1128
    %v1171 = vpack.c.bf16 %v1131, %v1130
    %v1172 = vpack.c.bf16 %v1133, %v1132
    %v1173 = vpack.c.bf16 %v1135, %v1134
    %v1174 = vpack.c.bf16 %v1137, %v1136
    %v1175 = vpack.c.bf16 %v1139, %v1138
    %v1176 = vpack.c.bf16 %v1141, %v1140
    %v1177 = vpack.c.bf16 %v1143, %v1142
    %v1178 = vpack.c.bf16 %v1145, %v1144
    %v1179 = vpack.c.bf16 %v1147, %v1146
    %v1180 = vld [vmem:[#allocation8] sm:$0xf]
    %v1181 = vld [vmem:[#allocation8 + $0x4] sm:$0xf]
    %v1182 = vld [vmem:[#allocation8 + $0x8] sm:$0xf]
    %v1183 = vld [vmem:[#allocation8 + $0xc] sm:$0xf]
    %v1184 = vld [vmem:[#allocation8 + $0x10] sm:$0xf]
    %v1185 = vld [vmem:[#allocation8 + $0x14] sm:$0xf]
    %v1186 = vld [vmem:[#allocation8 + $0x18] sm:$0xf]
    %v1187 = vld [vmem:[#allocation8 + $0x1c] sm:$0xf]
    %v1188 = vld [vmem:[#allocation8 + $0x20] sm:$0xf]
    %v1189 = vld [vmem:[#allocation8 + $0x24] sm:$0xf]
    %v1190 = vld [vmem:[#allocation8 + $0x28] sm:$0xf]
    %v1191 = vld [vmem:[#allocation8 + $0x2c] sm:$0xf]
    %v1192 = vld [vmem:[#allocation8 + $0x30] sm:$0xf]
    %v1193 = vld [vmem:[#allocation8 + $0x34] sm:$0xf]
    %v1194 = vld [vmem:[#allocation8 + $0x38] sm:$0xf]
    %v1195 = vld [vmem:[#allocation8 + $0x3c] sm:$0xf]
    %v1196 = vld [vmem:[#allocation10] sm:$0x1]
    %v1197 = vlaneseq
    %v1198 = vshrl.u32 %v1197, 7
    %v1199 = vsub.s32 0, %v1198
    %v1200 = vrot.slane %v1196, %v1199
    %v1217 = vunpack.c.l.b16 %v1180
    %v1218 = vunpack.c.l.b16 %v1181
    %v1219 = vunpack.c.l.b16 %v1182
    %v1220 = vunpack.c.l.b16 %v1183
    %v1221 = vunpack.c.l.b16 %v1184
    %v1222 = vunpack.c.l.b16 %v1185
    %v1223 = vunpack.c.l.b16 %v1186
    %v1224 = vunpack.c.l.b16 %v1187
    %v1225 = vunpack.c.l.b16 %v1188
    %v1226 = vunpack.c.l.b16 %v1189
    %v1227 = vunpack.c.l.b16 %v1190
    %v1228 = vunpack.c.l.b16 %v1191
    %v1229 = vunpack.c.l.b16 %v1192
    %v1230 = vunpack.c.l.b16 %v1193
    %v1231 = vunpack.c.l.b16 %v1194
    %v1232 = vunpack.c.l.b16 %v1195
    %v1233 = vpack.c.b16 %v1218, %v1217
    %v1234 = vpack.c.b16 %v1220, %v1219
    %v1235 = vpack.c.b16 %v1222, %v1221
    %v1236 = vpack.c.b16 %v1224, %v1223
    %v1237 = vpack.c.b16 %v1226, %v1225
    %v1238 = vpack.c.b16 %v1228, %v1227
    %v1239 = vpack.c.b16 %v1230, %v1229
    %v1240 = vpack.c.b16 %v1232, %v1231
    %1249 = vmatprep.subr.bf16.mxu0 0
    %1250 = vmatpush1.bf16.msra.mxu0 %v1233
    %1251 = vmatprep.subr.bf16.mxu0 0
    %1252 = vmatpush1.bf16.msra.mxu0 %v1234
    %1253 = vmatprep.subr.bf16.mxu0 0
    %1254 = vmatpush1.bf16.msra.mxu0 %v1235
    %1255 = vmatprep.subr.bf16.mxu0 0
    %1256 = vmatpush1.bf16.msra.mxu0 %v1236
    %1257 = vmatprep.subr.bf16.mxu0 0
    %1258 = vmatpush1.bf16.msra.mxu0 %v1237
    %1259 = vmatprep.subr.bf16.mxu0 0
    %1260 = vmatpush1.bf16.msra.mxu0 %v1238
    %1261 = vmatprep.subr.bf16.mxu0 0
    %1262 = vmatpush1.bf16.msra.mxu0 %v1239
    %1263 = vmatprep.subr.bf16.mxu0 0
    %1264 = vmatpush1.bf16.msra.mxu0 %v1240
    %1265 = vmatprep.subr.bf16.mxu0 0
    %1266 = vmatpush1.bf16.msra.mxu0 0
    %1267 = vmatprep.subr.bf16.mxu0 0
    %1268 = vmatpush1.bf16.msra.mxu0 0
    %1269 = vmatprep.subr.bf16.mxu0 0
    %1270 = vmatpush1.bf16.msra.mxu0 0
    %1271 = vmatprep.subr.bf16.mxu0 0
    %1272 = vmatpush1.bf16.msra.mxu0 0
    %1273 = vmatprep.subr.bf16.mxu0 0
    %1274 = vmatpush1.bf16.msra.mxu0 0
    %1275 = vmatprep.subr.bf16.mxu0 0
    %1276 = vmatpush1.bf16.msra.mxu0 0
    %1277 = vmatprep.subr.bf16.mxu0 0
    %1278 = vmatpush1.bf16.msra.mxu0 0
    %1279 = vmatprep.subr.bf16.mxu0 0
    %1280 = vmatpush1.bf16.msra.mxu0 0
    %1281 = vmatprep.mubr.bf16.mxu0 0
    %1282 = vmatmul.mubr.bf16.gmra.mrb[0].mxu0 %v1148
    %v1283 = vpop.f32.mrb[0].mxu0
    %v1284 = vadd.f32 %v1200, %v1283
    %v1285 = vpop.f32.mrb[0].mxu0
    %v1286 = vpop.f32.mrb[0].mxu0
    %v1287 = vadd.f32 %v1200, %v1286
    %v1288 = vpop.f32.mrb[0].mxu0
    %1289 = vmatprep.mubr.bf16.mxu0 0
    %1290 = vmatmul.mubr.bf16.gmra.mrb[0].mxu0 %v1149
    %v1291 = vpop.f32.mrb[0].mxu0
    %v1292 = vadd.f32 %v1200, %v1291
    %v1293 = vpop.f32.mrb[0].mxu0
    %v1294 = vpop.f32.mrb[0].mxu0
    %v1295 = vadd.f32 %v1200, %v1294
    %v1296 = vpop.f32.mrb[0].mxu0
    %1297 = vmatprep.mubr.bf16.mxu0 0
    %1298 = vmatmul.mubr.bf16.gmra.mrb[0].mxu0 %v1150
    %v1299 = vpop.f32.mrb[0].mxu0
    %v1300 = vadd.f32 %v1200, %v1299
    %v1301 = vpop.f32.mrb[0].mxu0
    %v1302 = vpop.f32.mrb[0].mxu0
    %v1303 = vadd.f32 %v1200, %v1302
    %v1304 = vpop.f32.mrb[0].mxu0
    %1305 = vmatprep.mubr.bf16.mxu0 0
    %1306 = vmatmul.mubr.bf16.gmra.mrb[0].mxu0 %v1151
    %v1307 = vpop.f32.mrb[0].mxu0
    %v1308 = vadd.f32 %v1200, %v1307
    %v1309 = vpop.f32.mrb[0].mxu0
    %v1310 = vpop.f32.mrb[0].mxu0
    %v1311 = vadd.f32 %v1200, %v1310
    %v1312 = vpop.f32.mrb[0].mxu0
    %1313 = vmatprep.mubr.bf16.mxu0 0
    %1314 = vmatmul.mubr.bf16.gmra.mrb[0].mxu0 %v1152
    %v1315 = vpop.f32.mrb[0].mxu0
    %v1316 = vadd.f32 %v1200, %v1315
    %v1317 = vpop.f32.mrb[0].mxu0
    %v1318 = vpop.f32.mrb[0].mxu0
    %v1319 = vadd.f32 %v1200, %v1318
    %v1320 = vpop.f32.mrb[0].mxu0
    %1321 = vmatprep.mubr.bf16.mxu0 0
    %1322 = vmatmul.mubr.bf16.gmra.mrb[0].mxu0 %v1153
    %v1323 = vpop.f32.mrb[0].mxu0
    %v1324 = vadd.f32 %v1200, %v1323
    %v1325 = vpop.f32.mrb[0].mxu0
    %v1326 = vpop.f32.mrb[0].mxu0
    %v1327 = vadd.f32 %v1200, %v1326
    %v1328 = vpop.f32.mrb[0].mxu0
    %1329 = vmatprep.mubr.bf16.mxu0 0
    %1330 = vmatmul.mubr.bf16.gmra.mrb[0].mxu0 %v1154
    %v1331 = vpop.f32.mrb[0].mxu0
    %v1332 = vadd.f32 %v1200, %v1331
    %v1333 = vpop.f32.mrb[0].mxu0
    %v1334 = vpop.f32.mrb[0].mxu0
    %v1335 = vadd.f32 %v1200, %v1334
    %v1336 = vpop.f32.mrb[0].mxu0
    %1337 = vmatprep.mubr.bf16.mxu0 0
    %1338 = vmatmul.mubr.bf16.gmra.mrb[0].mxu0 %v1155
    %v1339 = vpop.f32.mrb[0].mxu0
    %v1340 = vadd.f32 %v1200, %v1339
    %v1341 = vpop.f32.mrb[0].mxu0
    %v1342 = vpop.f32.mrb[0].mxu0
    %v1343 = vadd.f32 %v1200, %v1342
    %v1344 = vpop.f32.mrb[0].mxu0
    %1345 = vmatprep.mubr.bf16.mxu0 0
    %1346 = vmatmul.mubr.bf16.gmra.mrb[0].mxu0 %v1156
    %v1347 = vpop.f32.mrb[0].mxu0
    %v1348 = vadd.f32 %v1200, %v1347
    %v1349 = vpop.f32.mrb[0].mxu0
    %v1350 = vpop.f32.mrb[0].mxu0
    %v1351 = vadd.f32 %v1200, %v1350
    %v1352 = vpop.f32.mrb[0].mxu0
    %1353 = vmatprep.mubr.bf16.mxu0 0
    %1354 = vmatmul.mubr.bf16.gmra.mrb[0].mxu0 %v1157
    %v1355 = vpop.f32.mrb[0].mxu0
    %v1356 = vadd.f32 %v1200, %v1355
    %v1357 = vpop.f32.mrb[0].mxu0
    %v1358 = vpop.f32.mrb[0].mxu0
    %v1359 = vadd.f32 %v1200, %v1358
    %v1360 = vpop.f32.mrb[0].mxu0
    %1361 = vmatprep.mubr.bf16.mxu0 0
    %1362 = vmatmul.mubr.bf16.gmra.mrb[0].mxu0 %v1158
    %v1363 = vpop.f32.mrb[0].mxu0
    %v1364 = vadd.f32 %v1200, %v1363
    %v1365 = vpop.f32.mrb[0].mxu0
    %v1366 = vpop.f32.mrb[0].mxu0
    %v1367 = vadd.f32 %v1200, %v1366
    %v1368 = vpop.f32.mrb[0].mxu0
    %1369 = vmatprep.mubr.bf16.mxu0 0
    %1370 = vmatmul.mubr.bf16.gmra.mrb[0].mxu0 %v1159
    %v1371 = vpop.f32.mrb[0].mxu0
    %v1372 = vadd.f32 %v1200, %v1371
    %v1373 = vpop.f32.mrb[0].mxu0
    %v1374 = vpop.f32.mrb[0].mxu0
    %v1375 = vadd.f32 %v1200, %v1374
    %v1376 = vpop.f32.mrb[0].mxu0
    %1377 = vmatprep.mubr.bf16.mxu0 0
    %1378 = vmatmul.mubr.bf16.gmra.mrb[0].mxu0 %v1160
    %v1379 = vpop.f32.mrb[0].mxu0
    %v1380 = vadd.f32 %v1200, %v1379
    %v1381 = vpop.f32.mrb[0].mxu0
    %v1382 = vpop.f32.mrb[0].mxu0
    %v1383 = vadd.f32 %v1200, %v1382
    %v1384 = vpop.f32.mrb[0].mxu0
    %1385 = vmatprep.mubr.bf16.mxu0 0
    %1386 = vmatmul.mubr.bf16.gmra.mrb[0].mxu0 %v1161
    %v1387 = vpop.f32.mrb[0].mxu0
    %v1388 = vadd.f32 %v1200, %v1387
    %v1389 = vpop.f32.mrb[0].mxu0
    %v1390 = vpop.f32.mrb[0].mxu0
    %v1391 = vadd.f32 %v1200, %v1390
    %v1392 = vpop.f32.mrb[0].mxu0
    %1393 = vmatprep.mubr.bf16.mxu0 0
    %1394 = vmatmul.mubr.bf16.gmra.mrb[0].mxu0 %v1162
    %v1395 = vpop.f32.mrb[0].mxu0
    %v1396 = vadd.f32 %v1200, %v1395
    %v1397 = vpop.f32.mrb[0].mxu0
    %v1398 = vpop.f32.mrb[0].mxu0
    %v1399 = vadd.f32 %v1200, %v1398
    %v1400 = vpop.f32.mrb[0].mxu0
    %1401 = vmatprep.mubr.bf16.mxu0 0
    %1402 = vmatmul.mubr.bf16.gmra.mrb[0].mxu0 %v1163
    %v1403 = vpop.f32.mrb[0].mxu0
    %v1404 = vadd.f32 %v1200, %v1403
    %v1405 = vpop.f32.mrb[0].mxu0
    %v1406 = vpop.f32.mrb[0].mxu0
    %v1407 = vadd.f32 %v1200, %v1406
    %v1408 = vpop.f32.mrb[0].mxu0
    %1409 = vmatprep.mubr.bf16.mxu0 0
    %1410 = vmatmul.mubr.bf16.gmra.mrb[0].mxu0 %v1164
    %v1411 = vpop.f32.mrb[0].mxu0
    %v1412 = vadd.f32 %v1200, %v1411
    %v1413 = vpop.f32.mrb[0].mxu0
    %v1414 = vpop.f32.mrb[0].mxu0
    %v1415 = vadd.f32 %v1200, %v1414
    %v1416 = vpop.f32.mrb[0].mxu0
    %1417 = vmatprep.mubr.bf16.mxu0 0
    %1418 = vmatmul.mubr.bf16.gmra.mrb[0].mxu0 %v1165
    %v1419 = vpop.f32.mrb[0].mxu0
    %v1420 = vadd.f32 %v1200, %v1419
    %v1421 = vpop.f32.mrb[0].mxu0
    %v1422 = vpop.f32.mrb[0].mxu0
    %v1423 = vadd.f32 %v1200, %v1422
    %v1424 = vpop.f32.mrb[0].mxu0
    %1425 = vmatprep.mubr.bf16.mxu0 0
    %1426 = vmatmul.mubr.bf16.gmra.mrb[0].mxu0 %v1166
    %v1427 = vpop.f32.mrb[0].mxu0
    %v1428 = vadd.f32 %v1200, %v1427
    %v1429 = vpop.f32.mrb[0].mxu0
    %v1430 = vpop.f32.mrb[0].mxu0
    %v1431 = vadd.f32 %v1200, %v1430
    %v1432 = vpop.f32.mrb[0].mxu0
    %1433 = vmatprep.mubr.bf16.mxu0 0
    %1434 = vmatmul.mubr.bf16.gmra.mrb[0].mxu0 %v1167
    %v1435 = vpop.f32.mrb[0].mxu0
    %v1436 = vadd.f32 %v1200, %v1435
    %v1437 = vpop.f32.mrb[0].mxu0
    %v1438 = vpop.f32.mrb[0].mxu0
    %v1439 = vadd.f32 %v1200, %v1438
    %v1440 = vpop.f32.mrb[0].mxu0
    %1441 = vmatprep.mubr.bf16.mxu0 0
    %1442 = vmatmul.mubr.bf16.gmra.mrb[0].mxu0 %v1168
    %v1443 = vpop.f32.mrb[0].mxu0
    %v1444 = vadd.f32 %v1200, %v1443
    %v1445 = vpop.f32.mrb[0].mxu0
    %v1446 = vpop.f32.mrb[0].mxu0
    %v1447 = vadd.f32 %v1200, %v1446
    %v1448 = vpop.f32.mrb[0].mxu0
    %1449 = vmatprep.mubr.bf16.mxu0 0
    %1450 = vmatmul.mubr.bf16.gmra.mrb[0].mxu0 %v1169
    %v1451 = vpop.f32.mrb[0].mxu0
    %v1452 = vadd.f32 %v1200, %v1451
    %v1453 = vpop.f32.mrb[0].mxu0
    %v1454 = vpop.f32.mrb[0].mxu0
    %v1455 = vadd.f32 %v1200, %v1454
    %v1456 = vpop.f32.mrb[0].mxu0
    %1457 = vmatprep.mubr.bf16.mxu0 0
    %1458 = vmatmul.mubr.bf16.gmra.mrb[0].mxu0 %v1170
    %v1459 = vpop.f32.mrb[0].mxu0
    %v1460 = vadd.f32 %v1200, %v1459
    %v1461 = vpop.f32.mrb[0].mxu0
    %v1462 = vpop.f32.mrb[0].mxu0
    %v1463 = vadd.f32 %v1200, %v1462
    %v1464 = vpop.f32.mrb[0].mxu0
    %1465 = vmatprep.mubr.bf16.mxu0 0
    %1466 = vmatmul.mubr.bf16.gmra.mrb[0].mxu0 %v1171
    %v1467 = vpop.f32.mrb[0].mxu0
    %v1468 = vadd.f32 %v1200, %v1467
    %v1469 = vpop.f32.mrb[0].mxu0
    %v1470 = vpop.f32.mrb[0].mxu0
    %v1471 = vadd.f32 %v1200, %v1470
    %v1472 = vpop.f32.mrb[0].mxu0
    %1473 = vmatprep.mubr.bf16.mxu0 0
    %1474 = vmatmul.mubr.bf16.gmra.mrb[0].mxu0 %v1172
    %v1475 = vpop.f32.mrb[0].mxu0
    %v1476 = vadd.f32 %v1200, %v1475
    %v1477 = vpop.f32.mrb[0].mxu0
    %v1478 = vpop.f32.mrb[0].mxu0
    %v1479 = vadd.f32 %v1200, %v1478
    %v1480 = vpop.f32.mrb[0].mxu0
    %1481 = vmatprep.mubr.bf16.mxu0 0
    %1482 = vmatmul.mubr.bf16.gmra.mrb[0].mxu0 %v1173
    %v1483 = vpop.f32.mrb[0].mxu0
    %v1484 = vadd.f32 %v1200, %v1483
    %v1485 = vpop.f32.mrb[0].mxu0
    %v1486 = vpop.f32.mrb[0].mxu0
    %v1487 = vadd.f32 %v1200, %v1486
    %v1488 = vpop.f32.mrb[0].mxu0
    %1489 = vmatprep.mubr.bf16.mxu0 0
    %1490 = vmatmul.mubr.bf16.gmra.mrb[0].mxu0 %v1174
    %v1491 = vpop.f32.mrb[0].mxu0
    %v1492 = vadd.f32 %v1200, %v1491
    %v1493 = vpop.f32.mrb[0].mxu0
    %v1494 = vpop.f32.mrb[0].mxu0
    %v1495 = vadd.f32 %v1200, %v1494
    %v1496 = vpop.f32.mrb[0].mxu0
    %1497 = vmatprep.mubr.bf16.mxu0 0
    %1498 = vmatmul.mubr.bf16.gmra.mrb[0].mxu0 %v1175
    %v1499 = vpop.f32.mrb[0].mxu0
    %v1500 = vadd.f32 %v1200, %v1499
    %v1501 = vpop.f32.mrb[0].mxu0
    %v1502 = vpop.f32.mrb[0].mxu0
    %v1503 = vadd.f32 %v1200, %v1502
    %v1504 = vpop.f32.mrb[0].mxu0
    %1505 = vmatprep.mubr.bf16.mxu0 0
    %1506 = vmatmul.mubr.bf16.gmra.mrb[0].mxu0 %v1176
    %v1507 = vpop.f32.mrb[0].mxu0
    %v1508 = vadd.f32 %v1200, %v1507
    %v1509 = vpop.f32.mrb[0].mxu0
    %v1510 = vpop.f32.mrb[0].mxu0
    %v1511 = vadd.f32 %v1200, %v1510
    %v1512 = vpop.f32.mrb[0].mxu0
    %1513 = vmatprep.mubr.bf16.mxu0 0
    %1514 = vmatmul.mubr.bf16.gmra.mrb[0].mxu0 %v1177
    %v1515 = vpop.f32.mrb[0].mxu0
    %v1516 = vadd.f32 %v1200, %v1515
    %v1517 = vpop.f32.mrb[0].mxu0
    %v1518 = vpop.f32.mrb[0].mxu0
    %v1519 = vadd.f32 %v1200, %v1518
    %v1520 = vpop.f32.mrb[0].mxu0
    %1521 = vmatprep.mubr.bf16.mxu0 0
    %1522 = vmatmul.mubr.bf16.gmra.mrb[0].mxu0 %v1178
    %v1523 = vpop.f32.mrb[0].mxu0
    %v1524 = vadd.f32 %v1200, %v1523
    %v1525 = vpop.f32.mrb[0].mxu0
    %v1526 = vpop.f32.mrb[0].mxu0
    %v1527 = vadd.f32 %v1200, %v1526
    %v1528 = vpop.f32.mrb[0].mxu0
    %1529 = vmatprep.mubr.bf16.mxu0 0
    %1530 = vmatmul.mubr.bf16.gmra.mrb[0].mxu0 %v1179
    %v1531 = vpop.f32.mrb[0].mxu0
    %v1532 = vadd.f32 %v1200, %v1531
    %v1533 = vpop.f32.mrb[0].mxu0
    %v1534 = vpop.f32.mrb[0].mxu0
    %v1535 = vadd.f32 %v1200, %v1534
    %v1536 = vpop.f32.mrb[0].mxu0
    %1537 = vdwg.mxu0
    %v1538 = vpack.c.bf16 %v1287, %v1284
    %v1539 = vpack.c.bf16 %v1295, %v1292
    %v1540 = vpack.c.bf16 %v1303, %v1300
    %v1541 = vpack.c.bf16 %v1311, %v1308
    %v1542 = vpack.c.bf16 %v1319, %v1316
    %v1543 = vpack.c.bf16 %v1327, %v1324
    %v1544 = vpack.c.bf16 %v1335, %v1332
    %v1545 = vpack.c.bf16 %v1343, %v1340
    %v1546 = vpack.c.bf16 %v1351, %v1348
    %v1547 = vpack.c.bf16 %v1359, %v1356
    %v1548 = vpack.c.bf16 %v1367, %v1364
    %v1549 = vpack.c.bf16 %v1375, %v1372
    %v1550 = vpack.c.bf16 %v1383, %v1380
    %v1551 = vpack.c.bf16 %v1391, %v1388
    %v1552 = vpack.c.bf16 %v1399, %v1396
    %v1553 = vpack.c.bf16 %v1407, %v1404
    %v1554 = vpack.c.bf16 %v1415, %v1412
    %v1555 = vpack.c.bf16 %v1423, %v1420
    %v1556 = vpack.c.bf16 %v1431, %v1428
    %v1557 = vpack.c.bf16 %v1439, %v1436
    %v1558 = vpack.c.bf16 %v1447, %v1444
    %v1559 = vpack.c.bf16 %v1455, %v1452
    %v1560 = vpack.c.bf16 %v1463, %v1460
    %v1561 = vpack.c.bf16 %v1471, %v1468
    %v1562 = vpack.c.bf16 %v1479, %v1476
    %v1563 = vpack.c.bf16 %v1487, %v1484
    %v1564 = vpack.c.bf16 %v1495, %v1492
    %v1565 = vpack.c.bf16 %v1503, %v1500
    %v1566 = vpack.c.bf16 %v1511, %v1508
    %v1567 = vpack.c.bf16 %v1519, %v1516
    %v1568 = vpack.c.bf16 %v1527, %v1524
    %v1569 = vpack.c.bf16 %v1535, %v1532
    %v1602 = vunpack.c.l.b16 %v1538
    %v1603 = vunpack.c.h.b16 %v1538
    %v1604 = vunpack.c.l.b16 %v1539
    %v1605 = vunpack.c.h.b16 %v1539
    %v1606 = vunpack.c.l.b16 %v1540
    %v1607 = vunpack.c.h.b16 %v1540
    %v1608 = vunpack.c.l.b16 %v1541
    %v1609 = vunpack.c.h.b16 %v1541
    %v1610 = vunpack.c.l.b16 %v1542
    %v1611 = vunpack.c.h.b16 %v1542
    %v1612 = vunpack.c.l.b16 %v1543
    %v1613 = vunpack.c.h.b16 %v1543
    %v1614 = vunpack.c.l.b16 %v1544
    %v1615 = vunpack.c.h.b16 %v1544
    %v1616 = vunpack.c.l.b16 %v1545
    %v1617 = vunpack.c.h.b16 %v1545
    %v1618 = vunpack.c.l.b16 %v1546
    %v1619 = vunpack.c.h.b16 %v1546
    %v1620 = vunpack.c.l.b16 %v1547
    %v1621 = vunpack.c.h.b16 %v1547
    %v1622 = vunpack.c.l.b16 %v1548
    %v1623 = vunpack.c.h.b16 %v1548
    %v1624 = vunpack.c.l.b16 %v1549
    %v1625 = vunpack.c.h.b16 %v1549
    %v1626 = vunpack.c.l.b16 %v1550
    %v1627 = vunpack.c.h.b16 %v1550
    %v1628 = vunpack.c.l.b16 %v1551
    %v1629 = vunpack.c.h.b16 %v1551
    %v1630 = vunpack.c.l.b16 %v1552
    %v1631 = vunpack.c.h.b16 %v1552
    %v1632 = vunpack.c.l.b16 %v1553
    %v1633 = vunpack.c.h.b16 %v1553
    %v1634 = vunpack.c.l.b16 %v1554
    %v1635 = vunpack.c.h.b16 %v1554
    %v1636 = vunpack.c.l.b16 %v1555
    %v1637 = vunpack.c.h.b16 %v1555
    %v1638 = vunpack.c.l.b16 %v1556
    %v1639 = vunpack.c.h.b16 %v1556
    %v1640 = vunpack.c.l.b16 %v1557
    %v1641 = vunpack.c.h.b16 %v1557
    %v1642 = vunpack.c.l.b16 %v1558
    %v1643 = vunpack.c.h.b16 %v1558
    %v1644 = vunpack.c.l.b16 %v1559
    %v1645 = vunpack.c.h.b16 %v1559
    %v1646 = vunpack.c.l.b16 %v1560
    %v1647 = vunpack.c.h.b16 %v1560
    %v1648 = vunpack.c.l.b16 %v1561
    %v1649 = vunpack.c.h.b16 %v1561
    %v1650 = vunpack.c.l.b16 %v1562
    %v1651 = vunpack.c.h.b16 %v1562
    %v1652 = vunpack.c.l.b16 %v1563
    %v1653 = vunpack.c.h.b16 %v1563
    %v1654 = vunpack.c.l.b16 %v1564
    %v1655 = vunpack.c.h.b16 %v1564
    %v1656 = vunpack.c.l.b16 %v1565
    %v1657 = vunpack.c.h.b16 %v1565
    %v1658 = vunpack.c.l.b16 %v1566
    %v1659 = vunpack.c.h.b16 %v1566
    %v1660 = vunpack.c.l.b16 %v1567
    %v1661 = vunpack.c.h.b16 %v1567
    %v1662 = vunpack.c.l.b16 %v1568
    %v1663 = vunpack.c.h.b16 %v1568
    %v1664 = vunpack.c.l.b16 %v1569
    %v1665 = vunpack.c.h.b16 %v1569
    %v1666 = vpack.c.b16 %v1602, %v1602
    %v1667 = vpack.c.b16 %v1603, %v1603
    %v1668 = vpack.c.b16 %v1604, %v1604
    %v1669 = vpack.c.b16 %v1605, %v1605
    %v1670 = vpack.c.b16 %v1606, %v1606
    %v1671 = vpack.c.b16 %v1607, %v1607
    %v1672 = vpack.c.b16 %v1608, %v1608
    %v1673 = vpack.c.b16 %v1609, %v1609
    %v1674 = vpack.c.b16 %v1610, %v1610
    %v1675 = vpack.c.b16 %v1611, %v1611
    %v1676 = vpack.c.b16 %v1612, %v1612
    %v1677 = vpack.c.b16 %v1613, %v1613
    %v1678 = vpack.c.b16 %v1614, %v1614
    %v1679 = vpack.c.b16 %v1615, %v1615
    %v1680 = vpack.c.b16 %v1616, %v1616
    %v1681 = vpack.c.b16 %v1617, %v1617
    %v1682 = vpack.c.b16 %v1618, %v1618
    %v1683 = vpack.c.b16 %v1619, %v1619
    %v1684 = vpack.c.b16 %v1620, %v1620
    %v1685 = vpack.c.b16 %v1621, %v1621
    %v1686 = vpack.c.b16 %v1622, %v1622
    %v1687 = vpack.c.b16 %v1623, %v1623
    %v1688 = vpack.c.b16 %v1624, %v1624
    %v1689 = vpack.c.b16 %v1625, %v1625
    %v1690 = vpack.c.b16 %v1626, %v1626
    %v1691 = vpack.c.b16 %v1627, %v1627
    %v1692 = vpack.c.b16 %v1628, %v1628
    %v1693 = vpack.c.b16 %v1629, %v1629
    %v1694 = vpack.c.b16 %v1630, %v1630
    %v1695 = vpack.c.b16 %v1631, %v1631
    %v1696 = vpack.c.b16 %v1632, %v1632
    %v1697 = vpack.c.b16 %v1633, %v1633
    %v1698 = vpack.c.b16 %v1634, %v1634
    %v1699 = vpack.c.b16 %v1635, %v1635
    %v1700 = vpack.c.b16 %v1636, %v1636
    %v1701 = vpack.c.b16 %v1637, %v1637
    %v1702 = vpack.c.b16 %v1638, %v1638
    %v1703 = vpack.c.b16 %v1639, %v1639
    %v1704 = vpack.c.b16 %v1640, %v1640
    %v1705 = vpack.c.b16 %v1641, %v1641
    %v1706 = vpack.c.b16 %v1642, %v1642
    %v1707 = vpack.c.b16 %v1643, %v1643
    %v1708 = vpack.c.b16 %v1644, %v1644
    %v1709 = vpack.c.b16 %v1645, %v1645
    %v1710 = vpack.c.b16 %v1646, %v1646
    %v1711 = vpack.c.b16 %v1647, %v1647
    %v1712 = vpack.c.b16 %v1648, %v1648
    %v1713 = vpack.c.b16 %v1649, %v1649
    %v1714 = vpack.c.b16 %v1650, %v1650
    %v1715 = vpack.c.b16 %v1651, %v1651
    %v1716 = vpack.c.b16 %v1652, %v1652
    %v1717 = vpack.c.b16 %v1653, %v1653
    %v1718 = vpack.c.b16 %v1654, %v1654
    %v1719 = vpack.c.b16 %v1655, %v1655
    %v1720 = vpack.c.b16 %v1656, %v1656
    %v1721 = vpack.c.b16 %v1657, %v1657
    %v1722 = vpack.c.b16 %v1658, %v1658
    %v1723 = vpack.c.b16 %v1659, %v1659
    %v1724 = vpack.c.b16 %v1660, %v1660
    %v1725 = vpack.c.b16 %v1661, %v1661
    %v1726 = vpack.c.b16 %v1662, %v1662
    %v1727 = vpack.c.b16 %v1663, %v1663
    %v1728 = vpack.c.b16 %v1664, %v1664
    %v1729 = vpack.c.b16 %v1665, %v1665
    %1794 = vst [vmem:[#allocation11] sm:$0xf] %v1666
    %1795 = vst [vmem:[#allocation11 + $0x4] sm:$0xf] %v1667
    %1796 = vst [vmem:[#allocation11 + $0x8] sm:$0xf] %v1668
    %1797 = vst [vmem:[#allocation11 + $0xc] sm:$0xf] %v1669
    %1798 = vst [vmem:[#allocation11 + $0x10] sm:$0xf] %v1670
    %1799 = vst [vmem:[#allocation11 + $0x14] sm:$0xf] %v1671
    %1800 = vst [vmem:[#allocation11 + $0x18] sm:$0xf] %v1672
    %1801 = vst [vmem:[#allocation11 + $0x1c] sm:$0xf] %v1673
    %1802 = vst [vmem:[#allocation11 + $0x20] sm:$0xf] %v1674
    %1803 = vst [vmem:[#allocation11 + $0x24] sm:$0xf] %v1675
    %1804 = vst [vmem:[#allocation11 + $0x28] sm:$0xf] %v1676
    %1805 = vst [vmem:[#allocation11 + $0x2c] sm:$0xf] %v1677
    %1806 = vst [vmem:[#allocation11 + $0x30] sm:$0xf] %v1678
    %1807 = vst [vmem:[#allocation11 + $0x34] sm:$0xf] %v1679
    %1808 = vst [vmem:[#allocation11 + $0x38] sm:$0xf] %v1680
    %1809 = vst [vmem:[#allocation11 + $0x3c] sm:$0xf] %v1681
    %1810 = vst [vmem:[#allocation11 + $0x40] sm:$0xf] %v1682
    %1811 = vst [vmem:[#allocation11 + $0x44] sm:$0xf] %v1683
    %1812 = vst [vmem:[#allocation11 + $0x48] sm:$0xf] %v1684
    %1813 = vst [vmem:[#allocation11 + $0x4c] sm:$0xf] %v1685
    %1814 = vst [vmem:[#allocation11 + $0x50] sm:$0xf] %v1686
    %1815 = vst [vmem:[#allocation11 + $0x54] sm:$0xf] %v1687
    %1816 = vst [vmem:[#allocation11 + $0x58] sm:$0xf] %v1688
    %1817 = vst [vmem:[#allocation11 + $0x5c] sm:$0xf] %v1689
    %1818 = vst [vmem:[#allocation11 + $0x60] sm:$0xf] %v1690
    %1819 = vst [vmem:[#allocation11 + $0x64] sm:$0xf] %v1691
    %1820 = vst [vmem:[#allocation11 + $0x68] sm:$0xf] %v1692
    %1821 = vst [vmem:[#allocation11 + $0x6c] sm:$0xf] %v1693
    %1822 = vst [vmem:[#allocation11 + $0x70] sm:$0xf] %v1694
    %1823 = vst [vmem:[#allocation11 + $0x74] sm:$0xf] %v1695
    %1824 = vst [vmem:[#allocation11 + $0x78] sm:$0xf] %v1696
    %1825 = vst [vmem:[#allocation11 + $0x7c] sm:$0xf] %v1697
    %1826 = vst [vmem:[#allocation11 + $0x80] sm:$0xf] %v1698
    %1827 = vst [vmem:[#allocation11 + $0x84] sm:$0xf] %v1699
    %1828 = vst [vmem:[#allocation11 + $0x88] sm:$0xf] %v1700
    %1829 = vst [vmem:[#allocation11 + $0x8c] sm:$0xf] %v1701
    %1830 = vst [vmem:[#allocation11 + $0x90] sm:$0xf] %v1702
    %1831 = vst [vmem:[#allocation11 + $0x94] sm:$0xf] %v1703
    %1832 = vst [vmem:[#allocation11 + $0x98] sm:$0xf] %v1704
    %1833 = vst [vmem:[#allocation11 + $0x9c] sm:$0xf] %v1705
    %1834 = vst [vmem:[#allocation11 + $0xa0] sm:$0xf] %v1706
    %1835 = vst [vmem:[#allocation11 + $0xa4] sm:$0xf] %v1707
    %1836 = vst [vmem:[#allocation11 + $0xa8] sm:$0xf] %v1708
    %1837 = vst [vmem:[#allocation11 + $0xac] sm:$0xf] %v1709
    %1838 = vst [vmem:[#allocation11 + $0xb0] sm:$0xf] %v1710
    %1839 = vst [vmem:[#allocation11 + $0xb4] sm:$0xf] %v1711
    %1840 = vst [vmem:[#allocation11 + $0xb8] sm:$0xf] %v1712
    %1841 = vst [vmem:[#allocation11 + $0xbc] sm:$0xf] %v1713
    %1842 = vst [vmem:[#allocation11 + $0xc0] sm:$0xf] %v1714
    %1843 = vst [vmem:[#allocation11 + $0xc4] sm:$0xf] %v1715
    %1844 = vst [vmem:[#allocation11 + $0xc8] sm:$0xf] %v1716
    %1845 = vst [vmem:[#allocation11 + $0xcc] sm:$0xf] %v1717
    %1846 = vst [vmem:[#allocation11 + $0xd0] sm:$0xf] %v1718
    %1847 = vst [vmem:[#allocation11 + $0xd4] sm:$0xf] %v1719
    %1848 = vst [vmem:[#allocation11 + $0xd8] sm:$0xf] %v1720
    %1849 = vst [vmem:[#allocation11 + $0xdc] sm:$0xf] %v1721
    %1850 = vst [vmem:[#allocation11 + $0xe0] sm:$0xf] %v1722
    %1851 = vst [vmem:[#allocation11 + $0xe4] sm:$0xf] %v1723
    %1852 = vst [vmem:[#allocation11 + $0xe8] sm:$0xf] %v1724
    %1853 = vst [vmem:[#allocation11 + $0xec] sm:$0xf] %v1725
    %1854 = vst [vmem:[#allocation11 + $0xf0] sm:$0xf] %v1726
    %1855 = vst [vmem:[#allocation11 + $0xf4] sm:$0xf] %v1727
    %1856 = vst [vmem:[#allocation11 + $0xf8] sm:$0xf] %v1728
    %1857 = vst [vmem:[#allocation11 + $0xfc] sm:$0xf] %v1729
    // Predicated region
    $region42: #{tpu_custom_call.1} parent=1 // pred_check
      _
    $region43: #{tpu_custom_call.1} parent=1 // pred_check_branch
      %1859 = sbr.rel (0) target = $region45
    $region44: #{tpu_custom_call.1} parent=1 // pred_region
      %s1861 = ssub.s32 4096, 4096
      %1862 = vsyncadd [#allocation4], %s1861
      %s1863 = sshll.u32 [#allocation11], 4
      %s1864 = int_to_ptr.vmem [resolvable:$true] %s1863
      %1869 = dma.vmem_to_hbm [thread:$0]  %s1864, 4096, %s5, [#allocation4], 64, 64, 4
    $region45: #{tpu_custom_call.1} parent=1 // pred_fallthru
      _
    // Predicated region
    $region46: #{tpu_custom_call.1} parent=1 // pred_check
      _
    $region47: #{tpu_custom_call.1} parent=1 // pred_check_branch
      %1871 = sbr.rel (0) target = $region49
    $region48: #{tpu_custom_call.1} parent=1 // pred_region
      %1872 = dma.done [#allocation4], 4096
    $region49: #{tpu_custom_call.1} parent=1 // pred_fallthru
      _
    %1873 = vsyncpa [#allocation3], 1
    %1874 = vsyncpa [#allocation6], 1
    %1875 = vsyncpa [#allocation9], 1
    %1876 = vsyncpa [#allocation4], 1

</llo_original>
